<compile_context>
chip_gen: v7x
topology: tpu7x:2x2x1
jax: 0.10.0
libtpu: 0.0.40
codegen_flags: <defaults>
</compile_context>

<pallas_src>
import functools

import jax
import jax.numpy as jnp
import numpy as np
from jax.experimental import pallas as pl
from jax.experimental.pallas import tpu as pltpu


# --------------------------------------------------------------------------- #
# Interpolation taps (PyTorch bilinear, align_corners=False, height axis only)
# --------------------------------------------------------------------------- #
def _height_taps(h_in: int, h_out: int):
    """Per-output-row (h0, h1, w0, w1) replicating PyTorch bilinear
    (align_corners=False) interpolation along height only.  Returned as plain
    Python lists: they are compile-time constants baked into the kernel."""
    scale = h_in / h_out
    oh = np.arange(h_out, dtype=np.float64)
    src = scale * (oh + 0.5) - 0.5
    src = np.maximum(src, 0.0)                    # PyTorch clamps negative src to 0
    h0 = np.minimum(np.floor(src).astype(np.int64), h_in - 1)
    h1 = np.minimum(h0 + 1, h_in - 1)
    w1 = (src - h0).astype(np.float64)
    w0 = 1.0 - w1
    return ([int(v) for v in h0], [int(v) for v in h1],
            [float(v) for v in w0], [float(v) for v in w1])


def _bilinear_height_matrix(h_in: int, h_out: int) -> jnp.ndarray:
    """Dense (h_out, h_in) matrix (reference / tiny-input fallback only)."""
    h0, h1, w0, w1 = _height_taps(h_in, h_out)
    mat = np.zeros((h_out, h_in), dtype=np.float32)
    for o in range(h_out):
        mat[o, h0[o]] += w0[o]
        mat[o, h1[o]] += w1[o]
    return jnp.asarray(mat)


# --------------------------------------------------------------------------- #
# Kernel: 2-tap banded height interpolation on a block of (N*C) slices.
# --------------------------------------------------------------------------- #
def _upsample_2tap_kernel(x_ref, o_ref, *, taps):
    # x_ref: (B, H_in, W)   o_ref: (B, H_out, W)
    # Taps (h0, h1, w0, w1) are compile-time constants -> the loop fully
    # unrolls into static sublane-indexed loads/stores; 3 flops per output
    # element, so the kernel stays HBM-bound for any H_in.
    h0s, h1s, w0s, w1s = taps
    for o, (h0, h1, w0, w1) in enumerate(zip(h0s, h1s, w0s, w1s)):
        x0 = x_ref[:, h0, :]
        if h1 == h0 or w1 == 0.0:
            # Exact row copy (w0 + w1 == 1 by construction).
            val = x0
        else:
            val = x0 * w0 + x_ref[:, h1, :] * w1
        o_ref[:, o, :] = val


# --------------------------------------------------------------------------- #
# Generation-aware tiling
# --------------------------------------------------------------------------- #
def _vmem_limit_bytes() -> int:
    """Scoped VMEM limit: ~75% of physical VMEM, capped at 96 MiB.
    v5e/v6e (128 MiB) -> 96 MiB; v7x (64 MiB/TC) -> 48 MiB."""
    cap = 64 * 1024 * 1024  # conservative default (v7x)
    try:
        cap = int(pltpu.get_tpu_info().vmem_capacity_bytes)
    except Exception:
        pass
    return max(32 * 1024 * 1024, min(96 * 1024 * 1024, (cap * 3) // 4))


def _pick_row_block(nc: int, h_in: int, h_out: int, w: int,
                    itemsize: int, vmem_limit: int) -> int:
    """Rows (of the N*C axis) per grid step."""
    bytes_per_row = (h_in + h_out) * w * itemsize
    # Double-buffered in + out blocks must fit in about half the scoped limit.
    b_vmem = max(1, (vmem_limit // 2) // (2 * bytes_per_row))
    # Keep >= 4 grid steps when possible: lets the pipeline overlap DMA with
    # compute and gives v7x's two TensorCores something to shard.
    b_steps = max(1, pl.cdiv(nc, 4))
    b = max(1, min(nc, b_vmem, b_steps))
    # Prefer an exact divisor of nc: every block full-width, no masked tail.
    while nc % b:
        b -= 1
    return b


# --------------------------------------------------------------------------- #
# Public wrapper
# --------------------------------------------------------------------------- #
def upsampling_conv_forward(x: jnp.ndarray, upsampling_factor: int = 2,
                            *, force_pallas: bool = False) -> jnp.ndarray:
    """x: (N, C, H, W) -> (N, C, H*factor, W), PyTorch bilinear semantics."""
    n, c, h_in, w = x.shape
    h_out = int(h_in * upsampling_factor)
    nc = n * c
    itemsize = jnp.dtype(x.dtype).itemsize

    # Tiny-problem fallback: fixed pallas_call / DMA setup overhead dominates
    # below a few hundred KiB of output; a fused XLA einsum is faster there.
    out_bytes = nc * h_out * w * itemsize
    if (not force_pallas) and out_bytes < 256 * 1024:
        wmat = _bilinear_height_matrix(h_in, h_out).astype(x.dtype)
        return jnp.einsum("oh,nchw->ncow", wmat, x)

    # Free (metadata-only) reshape: the kernel sees the native NCHW layout,
    # so HBM traffic is exactly one read of x and one write of y.
    x3 = x.reshape(nc, h_in, w)

    vmem_limit = _vmem_limit_bytes()
    b = _pick_row_block(nc, h_in, h_out, w, itemsize, vmem_limit)
    grid = (nc // b,)

    kernel = functools.partial(_upsample_2tap_kernel,
                               taps=_height_taps(h_in, h_out))

    y3 = pl.pallas_call(
        kernel,
        out_shape=jax.ShapeDtypeStruct((nc, h_out, w), x.dtype),
        grid_spec=pl.GridSpec(
            grid=grid,
            in_specs=[pl.BlockSpec((b, h_in, w), lambda i: (i, 0, 0))],
            out_specs=pl.BlockSpec((b, h_out, w), lambda i: (i, 0, 0)),
        ),
        compiler_params=pltpu.CompilerParams(
            # Row blocks are independent -> parallel (megacore sharding on v7x).
            dimension_semantics=("parallel",),
            vmem_limit_bytes=vmem_limit,
        ),
    )(x3)

    return y3.reshape(n, c, h_out, w)


# --------------------------------------------------------------------------- #
if __name__ == "__main__":
    # Module has no learned parameters (n_channels / kind are config only).
    key = jax.random.PRNGKey(0)
    x = jax.random.normal(key, (2, 4, 16, 16), dtype=jnp.float32)

    # Force the Pallas path so the kernel itself is exercised even at this
    # tiny test shape (the auto path would take the XLA fallback).
    out = upsampling_conv_forward(x, upsampling_factor=2, force_pallas=True)
    out = jax.block_until_ready(out)
    assert out.shape == (2, 4, 32, 16), out.shape

    # Cross-check against a pure-JAX reference of PyTorch bilinear semantics.
    wmat = _bilinear_height_matrix(16, 32)
    ref = jnp.einsum("oh,nchw->ncow", wmat, x)
    np.testing.assert_allclose(np.asarray(out), np.asarray(ref),
                               rtol=1e-5, atol=1e-5)

    # Also exercise the default (auto-fallback) entry point.
    out2 = jax.block_until_ready(upsampling_conv_forward(x, 2))
    np.testing.assert_allclose(np.asarray(out2), np.asarray(ref),
                               rtol=1e-5, atol=1e-5)

    print("KERNEL_OK")
</pallas_src>

<mosaic_0001>
module attributes {stable_mosaic.version = 11 : i64} {
  func.func @_upsample_2tap_kernel(%arg0: i32, %arg1: memref<2x16x16xf32, #tpu.memory_space<vmem>>, %arg2: memref<2x32x16xf32, #tpu.memory_space<vmem>>) attributes {dimension_semantics = [#tpu.dimension_semantics<parallel>], iteration_bounds = array<i64: 4>, scalar_prefetch = 0 : i64, scratch_operands = 0 : i64, tpu.core_type = #tpu.core_type<tc>, window_params = [{transform_indices = @transform_0, window_bounds = array<i64: 2, 16, 16>}, {transform_indices = @transform_1, window_bounds = array<i64: 2, 32, 16>}]} {
    %c0 = arith.constant 0 : index
    %c0_0 = arith.constant 0 : index
    %c0_1 = arith.constant 0 : index
    %0 = vector.load %arg1[%c0, %c0_0, %c0_1] : memref<2x16x16xf32, #tpu.memory_space<vmem>>, vector<2x1x16xf32>
    %1 = vector.shape_cast %0 : vector<2x1x16xf32> to vector<2x16xf32>
    %c0_2 = arith.constant 0 : index
    %c0_3 = arith.constant 0 : index
    %c0_4 = arith.constant 0 : index
    %2 = vector.load %arg2[%c0_2, %c0_3, %c0_4] : memref<2x32x16xf32, #tpu.memory_space<vmem>>, vector<2x1x16xf32>
    %3 = vector.shape_cast %2 : vector<2x1x16xf32> to vector<2x16xf32>
    %4 = vector.shape_cast %1 : vector<2x16xf32> to vector<2x1x16xf32>
    tpu.vector_store %arg2[%c0_2, %c0_3, %c0_4], %4 {strides = array<i32>} : memref<2x32x16xf32, #tpu.memory_space<vmem>>, vector<2x1x16xf32>,
    %c0_5 = arith.constant 0 : index
    %c0_6 = arith.constant 0 : index
    %c0_7 = arith.constant 0 : index
    %5 = vector.load %arg1[%c0_5, %c0_6, %c0_7] : memref<2x16x16xf32, #tpu.memory_space<vmem>>, vector<2x1x16xf32>
    %6 = vector.shape_cast %5 : vector<2x1x16xf32> to vector<2x16xf32>
    %cst = arith.constant 7.500000e-01 : f32
    %7 = vector.broadcast %cst : f32 to vector<2x16xf32>
    %8 = arith.mulf %6, %7 : vector<2x16xf32>
    %c0_8 = arith.constant 0 : index
    %c1 = arith.constant 1 : index
    %c0_9 = arith.constant 0 : index
    %9 = vector.load %arg1[%c0_8, %c1, %c0_9] : memref<2x16x16xf32, #tpu.memory_space<vmem>>, vector<2x1x16xf32>
    %10 = vector.shape_cast %9 : vector<2x1x16xf32> to vector<2x16xf32>
    %cst_10 = arith.constant 2.500000e-01 : f32
    %11 = vector.broadcast %cst_10 : f32 to vector<2x16xf32>
    %12 = arith.mulf %10, %11 : vector<2x16xf32>
    %13 = arith.addf %8, %12 : vector<2x16xf32>
    %c0_11 = arith.constant 0 : index
    %c1_12 = arith.constant 1 : index
    %c0_13 = arith.constant 0 : index
    %14 = vector.load %arg2[%c0_11, %c1_12, %c0_13] : memref<2x32x16xf32, #tpu.memory_space<vmem>>, vector<2x1x16xf32>
    %15 = vector.shape_cast %14 : vector<2x1x16xf32> to vector<2x16xf32>
    %16 = vector.shape_cast %13 : vector<2x16xf32> to vector<2x1x16xf32>
    tpu.vector_store %arg2[%c0_11, %c1_12, %c0_13], %16 {strides = array<i32>} : memref<2x32x16xf32, #tpu.memory_space<vmem>>, vector<2x1x16xf32>,
    %c0_14 = arith.constant 0 : index
    %c0_15 = arith.constant 0 : index
    %c0_16 = arith.constant 0 : index
    %17 = vector.load %arg1[%c0_14, %c0_15, %c0_16] : memref<2x16x16xf32, #tpu.memory_space<vmem>>, vector<2x1x16xf32>
    %18 = vector.shape_cast %17 : vector<2x1x16xf32> to vector<2x16xf32>
    %cst_17 = arith.constant 2.500000e-01 : f32
    %19 = vector.broadcast %cst_17 : f32 to vector<2x16xf32>
    %20 = arith.mulf %18, %19 : vector<2x16xf32>
    %c0_18 = arith.constant 0 : index
    %c1_19 = arith.constant 1 : index
    %c0_20 = arith.constant 0 : index
    %21 = vector.load %arg1[%c0_18, %c1_19, %c0_20] : memref<2x16x16xf32, #tpu.memory_space<vmem>>, vector<2x1x16xf32>
    %22 = vector.shape_cast %21 : vector<2x1x16xf32> to vector<2x16xf32>
    %cst_21 = arith.constant 7.500000e-01 : f32
    %23 = vector.broadcast %cst_21 : f32 to vector<2x16xf32>
    %24 = arith.mulf %22, %23 : vector<2x16xf32>
    %25 = arith.addf %20, %24 : vector<2x16xf32>
    %c0_22 = arith.constant 0 : index
    %c2 = arith.constant 2 : index
    %c0_23 = arith.constant 0 : index
    %26 = vector.load %arg2[%c0_22, %c2, %c0_23] : memref<2x32x16xf32, #tpu.memory_space<vmem>>, vector<2x1x16xf32>
    %27 = vector.shape_cast %26 : vector<2x1x16xf32> to vector<2x16xf32>
    %28 = vector.shape_cast %25 : vector<2x16xf32> to vector<2x1x16xf32>
    tpu.vector_store %arg2[%c0_22, %c2, %c0_23], %28 {strides = array<i32>} : memref<2x32x16xf32, #tpu.memory_space<vmem>>, vector<2x1x16xf32>,
    %c0_24 = arith.constant 0 : index
    %c1_25 = arith.constant 1 : index
    %c0_26 = arith.constant 0 : index
    %29 = vector.load %arg1[%c0_24, %c1_25, %c0_26] : memref<2x16x16xf32, #tpu.memory_space<vmem>>, vector<2x1x16xf32>
    %30 = vector.shape_cast %29 : vector<2x1x16xf32> to vector<2x16xf32>
    %cst_27 = arith.constant 7.500000e-01 : f32
    %31 = vector.broadcast %cst_27 : f32 to vector<2x16xf32>
    %32 = arith.mulf %30, %31 : vector<2x16xf32>
    %c0_28 = arith.constant 0 : index
    %c2_29 = arith.constant 2 : index
    %c0_30 = arith.constant 0 : index
    %33 = vector.load %arg1[%c0_28, %c2_29, %c0_30] : memref<2x16x16xf32, #tpu.memory_space<vmem>>, vector<2x1x16xf32>
    %34 = vector.shape_cast %33 : vector<2x1x16xf32> to vector<2x16xf32>
    %cst_31 = arith.constant 2.500000e-01 : f32
    %35 = vector.broadcast %cst_31 : f32 to vector<2x16xf32>
    %36 = arith.mulf %34, %35 : vector<2x16xf32>
    %37 = arith.addf %32, %36 : vector<2x16xf32>
    %c0_32 = arith.constant 0 : index
    %c3 = arith.constant 3 : index
    %c0_33 = arith.constant 0 : index
    %38 = vector.load %arg2[%c0_32, %c3, %c0_33] : memref<2x32x16xf32, #tpu.memory_space<vmem>>, vector<2x1x16xf32>
    %39 = vector.shape_cast %38 : vector<2x1x16xf32> to vector<2x16xf32>
    %40 = vector.shape_cast %37 : vector<2x16xf32> to vector<2x1x16xf32>
    tpu.vector_store %arg2[%c0_32, %c3, %c0_33], %40 {strides = array<i32>} : memref<2x32x16xf32, #tpu.memory_space<vmem>>, vector<2x1x16xf32>,
    %c0_34 = arith.constant 0 : index
    %c1_35 = arith.constant 1 : index
    %c0_36 = arith.constant 0 : index
    %41 = vector.load %arg1[%c0_34, %c1_35, %c0_36] : memref<2x16x16xf32, #tpu.memory_space<vmem>>, vector<2x1x16xf32>
    %42 = vector.shape_cast %41 : vector<2x1x16xf32> to vector<2x16xf32>
    %cst_37 = arith.constant 2.500000e-01 : f32
    %43 = vector.broadcast %cst_37 : f32 to vector<2x16xf32>
    %44 = arith.mulf %42, %43 : vector<2x16xf32>
    %c0_38 = arith.constant 0 : index
    %c2_39 = arith.constant 2 : index
    %c0_40 = arith.constant 0 : index
    %45 = vector.load %arg1[%c0_38, %c2_39, %c0_40] : memref<2x16x16xf32, #tpu.memory_space<vmem>>, vector<2x1x16xf32>
    %46 = vector.shape_cast %45 : vector<2x1x16xf32> to vector<2x16xf32>
    %cst_41 = arith.constant 7.500000e-01 : f32
    %47 = vector.broadcast %cst_41 : f32 to vector<2x16xf32>
    %48 = arith.mulf %46, %47 : vector<2x16xf32>
    %49 = arith.addf %44, %48 : vector<2x16xf32>
    %c0_42 = arith.constant 0 : index
    %c4 = arith.constant 4 : index
    %c0_43 = arith.constant 0 : index
    %50 = vector.load %arg2[%c0_42, %c4, %c0_43] : memref<2x32x16xf32, #tpu.memory_space<vmem>>, vector<2x1x16xf32>
    %51 = vector.shape_cast %50 : vector<2x1x16xf32> to vector<2x16xf32>
    %52 = vector.shape_cast %49 : vector<2x16xf32> to vector<2x1x16xf32>
    tpu.vector_store %arg2[%c0_42, %c4, %c0_43], %52 {strides = array<i32>} : memref<2x32x16xf32, #tpu.memory_space<vmem>>, vector<2x1x16xf32>,
    %c0_44 = arith.constant 0 : index
    %c2_45 = arith.constant 2 : index
    %c0_46 = arith.constant 0 : index
    %53 = vector.load %arg1[%c0_44, %c2_45, %c0_46] : memref<2x16x16xf32, #tpu.memory_space<vmem>>, vector<2x1x16xf32>
    %54 = vector.shape_cast %53 : vector<2x1x16xf32> to vector<2x16xf32>
    %cst_47 = arith.constant 7.500000e-01 : f32
    %55 = vector.broadcast %cst_47 : f32 to vector<2x16xf32>
    %56 = arith.mulf %54, %55 : vector<2x16xf32>
    %c0_48 = arith.constant 0 : index
    %c3_49 = arith.constant 3 : index
    %c0_50 = arith.constant 0 : index
    %57 = vector.load %arg1[%c0_48, %c3_49, %c0_50] : memref<2x16x16xf32, #tpu.memory_space<vmem>>, vector<2x1x16xf32>
    %58 = vector.shape_cast %57 : vector<2x1x16xf32> to vector<2x16xf32>
    %cst_51 = arith.constant 2.500000e-01 : f32
    %59 = vector.broadcast %cst_51 : f32 to vector<2x16xf32>
    %60 = arith.mulf %58, %59 : vector<2x16xf32>
    %61 = arith.addf %56, %60 : vector<2x16xf32>
    %c0_52 = arith.constant 0 : index
    %c5 = arith.constant 5 : index
    %c0_53 = arith.constant 0 : index
    %62 = vector.load %arg2[%c0_52, %c5, %c0_53] : memref<2x32x16xf32, #tpu.memory_space<vmem>>, vector<2x1x16xf32>
    %63 = vector.shape_cast %62 : vector<2x1x16xf32> to vector<2x16xf32>
    %64 = vector.shape_cast %61 : vector<2x16xf32> to vector<2x1x16xf32>
    tpu.vector_store %arg2[%c0_52, %c5, %c0_53], %64 {strides = array<i32>} : memref<2x32x16xf32, #tpu.memory_space<vmem>>, vector<2x1x16xf32>,
    %c0_54 = arith.constant 0 : index
    %c2_55 = arith.constant 2 : index
    %c0_56 = arith.constant 0 : index
    %65 = vector.load %arg1[%c0_54, %c2_55, %c0_56] : memref<2x16x16xf32, #tpu.memory_space<vmem>>, vector<2x1x16xf32>
    %66 = vector.shape_cast %65 : vector<2x1x16xf32> to vector<2x16xf32>
    %cst_57 = arith.constant 2.500000e-01 : f32
    %67 = vector.broadcast %cst_57 : f32 to vector<2x16xf32>
    %68 = arith.mulf %66, %67 : vector<2x16xf32>
    %c0_58 = arith.constant 0 : index
    %c3_59 = arith.constant 3 : index
    %c0_60 = arith.constant 0 : index
    %69 = vector.load %arg1[%c0_58, %c3_59, %c0_60] : memref<2x16x16xf32, #tpu.memory_space<vmem>>, vector<2x1x16xf32>
    %70 = vector.shape_cast %69 : vector<2x1x16xf32> to vector<2x16xf32>
    %cst_61 = arith.constant 7.500000e-01 : f32
    %71 = vector.broadcast %cst_61 : f32 to vector<2x16xf32>
    %72 = arith.mulf %70, %71 : vector<2x16xf32>
    %73 = arith.addf %68, %72 : vector<2x16xf32>
    %c0_62 = arith.constant 0 : index
    %c6 = arith.constant 6 : index
    %c0_63 = arith.constant 0 : index
    %74 = vector.load %arg2[%c0_62, %c6, %c0_63] : memref<2x32x16xf32, #tpu.memory_space<vmem>>, vector<2x1x16xf32>
    %75 = vector.shape_cast %74 : vector<2x1x16xf32> to vector<2x16xf32>
    %76 = vector.shape_cast %73 : vector<2x16xf32> to vector<2x1x16xf32>
    tpu.vector_store %arg2[%c0_62, %c6, %c0_63], %76 {strides = array<i32>} : memref<2x32x16xf32, #tpu.memory_space<vmem>>, vector<2x1x16xf32>,
    %c0_64 = arith.constant 0 : index
    %c3_65 = arith.constant 3 : index
    %c0_66 = arith.constant 0 : index
    %77 = vector.load %arg1[%c0_64, %c3_65, %c0_66] : memref<2x16x16xf32, #tpu.memory_space<vmem>>, vector<2x1x16xf32>
    %78 = vector.shape_cast %77 : vector<2x1x16xf32> to vector<2x16xf32>
    %cst_67 = arith.constant 7.500000e-01 : f32
    %79 = vector.broadcast %cst_67 : f32 to vector<2x16xf32>
    %80 = arith.mulf %78, %79 : vector<2x16xf32>
    %c0_68 = arith.constant 0 : index
    %c4_69 = arith.constant 4 : index
    %c0_70 = arith.constant 0 : index
    %81 = vector.load %arg1[%c0_68, %c4_69, %c0_70] : memref<2x16x16xf32, #tpu.memory_space<vmem>>, vector<2x1x16xf32>
    %82 = vector.shape_cast %81 : vector<2x1x16xf32> to vector<2x16xf32>
    %cst_71 = arith.constant 2.500000e-01 : f32
    %83 = vector.broadcast %cst_71 : f32 to vector<2x16xf32>
    %84 = arith.mulf %82, %83 : vector<2x16xf32>
    %85 = arith.addf %80, %84 : vector<2x16xf32>
    %c0_72 = arith.constant 0 : index
    %c7 = arith.constant 7 : index
    %c0_73 = arith.constant 0 : index
    %86 = vector.load %arg2[%c0_72, %c7, %c0_73] : memref<2x32x16xf32, #tpu.memory_space<vmem>>, vector<2x1x16xf32>
    %87 = vector.shape_cast %86 : vector<2x1x16xf32> to vector<2x16xf32>
    %88 = vector.shape_cast %85 : vector<2x16xf32> to vector<2x1x16xf32>
    tpu.vector_store %arg2[%c0_72, %c7, %c0_73], %88 {strides = array<i32>} : memref<2x32x16xf32, #tpu.memory_space<vmem>>, vector<2x1x16xf32>,
    %c0_74 = arith.constant 0 : index
    %c3_75 = arith.constant 3 : index
    %c0_76 = arith.constant 0 : index
    %89 = vector.load %arg1[%c0_74, %c3_75, %c0_76] : memref<2x16x16xf32, #tpu.memory_space<vmem>>, vector<2x1x16xf32>
    %90 = vector.shape_cast %89 : vector<2x1x16xf32> to vector<2x16xf32>
    %cst_77 = arith.constant 2.500000e-01 : f32
    %91 = vector.broadcast %cst_77 : f32 to vector<2x16xf32>
    %92 = arith.mulf %90, %91 : vector<2x16xf32>
    %c0_78 = arith.constant 0 : index
    %c4_79 = arith.constant 4 : index
    %c0_80 = arith.constant 0 : index
    %93 = vector.load %arg1[%c0_78, %c4_79, %c0_80] : memref<2x16x16xf32, #tpu.memory_space<vmem>>, vector<2x1x16xf32>
    %94 = vector.shape_cast %93 : vector<2x1x16xf32> to vector<2x16xf32>
    %cst_81 = arith.constant 7.500000e-01 : f32
    %95 = vector.broadcast %cst_81 : f32 to vector<2x16xf32>
    %96 = arith.mulf %94, %95 : vector<2x16xf32>
    %97 = arith.addf %92, %96 : vector<2x16xf32>
    %c0_82 = arith.constant 0 : index
    %c8 = arith.constant 8 : index
    %c0_83 = arith.constant 0 : index
    %98 = vector.load %arg2[%c0_82, %c8, %c0_83] : memref<2x32x16xf32, #tpu.memory_space<vmem>>, vector<2x1x16xf32>
    %99 = vector.shape_cast %98 : vector<2x1x16xf32> to vector<2x16xf32>
    %100 = vector.shape_cast %97 : vector<2x16xf32> to vector<2x1x16xf32>
    tpu.vector_store %arg2[%c0_82, %c8, %c0_83], %100 {strides = array<i32>} : memref<2x32x16xf32, #tpu.memory_space<vmem>>, vector<2x1x16xf32>,
    %c0_84 = arith.constant 0 : index
    %c4_85 = arith.constant 4 : index
    %c0_86 = arith.constant 0 : index
    %101 = vector.load %arg1[%c0_84, %c4_85, %c0_86] : memref<2x16x16xf32, #tpu.memory_space<vmem>>, vector<2x1x16xf32>
    %102 = vector.shape_cast %101 : vector<2x1x16xf32> to vector<2x16xf32>
    %cst_87 = arith.constant 7.500000e-01 : f32
    %103 = vector.broadcast %cst_87 : f32 to vector<2x16xf32>
    %104 = arith.mulf %102, %103 : vector<2x16xf32>
    %c0_88 = arith.constant 0 : index
    %c5_89 = arith.constant 5 : index
    %c0_90 = arith.constant 0 : index
    %105 = vector.load %arg1[%c0_88, %c5_89, %c0_90] : memref<2x16x16xf32, #tpu.memory_space<vmem>>, vector<2x1x16xf32>
    %106 = vector.shape_cast %105 : vector<2x1x16xf32> to vector<2x16xf32>
    %cst_91 = arith.constant 2.500000e-01 : f32
    %107 = vector.broadcast %cst_91 : f32 to vector<2x16xf32>
    %108 = arith.mulf %106, %107 : vector<2x16xf32>
    %109 = arith.addf %104, %108 : vector<2x16xf32>
    %c0_92 = arith.constant 0 : index
    %c9 = arith.constant 9 : index
    %c0_93 = arith.constant 0 : index
    %110 = vector.load %arg2[%c0_92, %c9, %c0_93] : memref<2x32x16xf32, #tpu.memory_space<vmem>>, vector<2x1x16xf32>
    %111 = vector.shape_cast %110 : vector<2x1x16xf32> to vector<2x16xf32>
    %112 = vector.shape_cast %109 : vector<2x16xf32> to vector<2x1x16xf32>
    tpu.vector_store %arg2[%c0_92, %c9, %c0_93], %112 {strides = array<i32>} : memref<2x32x16xf32, #tpu.memory_space<vmem>>, vector<2x1x16xf32>,
    %c0_94 = arith.constant 0 : index
    %c4_95 = arith.constant 4 : index
    %c0_96 = arith.constant 0 : index
    %113 = vector.load %arg1[%c0_94, %c4_95, %c0_96] : memref<2x16x16xf32, #tpu.memory_space<vmem>>, vector<2x1x16xf32>
    %114 = vector.shape_cast %113 : vector<2x1x16xf32> to vector<2x16xf32>
    %cst_97 = arith.constant 2.500000e-01 : f32
    %115 = vector.broadcast %cst_97 : f32 to vector<2x16xf32>
    %116 = arith.mulf %114, %115 : vector<2x16xf32>
    %c0_98 = arith.constant 0 : index
    %c5_99 = arith.constant 5 : index
    %c0_100 = arith.constant 0 : index
    %117 = vector.load %arg1[%c0_98, %c5_99, %c0_100] : memref<2x16x16xf32, #tpu.memory_space<vmem>>, vector<2x1x16xf32>
    %118 = vector.shape_cast %117 : vector<2x1x16xf32> to vector<2x16xf32>
    %cst_101 = arith.constant 7.500000e-01 : f32
    %119 = vector.broadcast %cst_101 : f32 to vector<2x16xf32>
    %120 = arith.mulf %118, %119 : vector<2x16xf32>
    %121 = arith.addf %116, %120 : vector<2x16xf32>
    %c0_102 = arith.constant 0 : index
    %c10 = arith.constant 10 : index
    %c0_103 = arith.constant 0 : index
    %122 = vector.load %arg2[%c0_102, %c10, %c0_103] : memref<2x32x16xf32, #tpu.memory_space<vmem>>, vector<2x1x16xf32>
    %123 = vector.shape_cast %122 : vector<2x1x16xf32> to vector<2x16xf32>
    %124 = vector.shape_cast %121 : vector<2x16xf32> to vector<2x1x16xf32>
    tpu.vector_store %arg2[%c0_102, %c10, %c0_103], %124 {strides = array<i32>} : memref<2x32x16xf32, #tpu.memory_space<vmem>>, vector<2x1x16xf32>,
    %c0_104 = arith.constant 0 : index
    %c5_105 = arith.constant 5 : index
    %c0_106 = arith.constant 0 : index
    %125 = vector.load %arg1[%c0_104, %c5_105, %c0_106] : memref<2x16x16xf32, #tpu.memory_space<vmem>>, vector<2x1x16xf32>
    %126 = vector.shape_cast %125 : vector<2x1x16xf32> to vector<2x16xf32>
    %cst_107 = arith.constant 7.500000e-01 : f32
    %127 = vector.broadcast %cst_107 : f32 to vector<2x16xf32>
    %128 = arith.mulf %126, %127 : vector<2x16xf32>
    %c0_108 = arith.constant 0 : index
    %c6_109 = arith.constant 6 : index
    %c0_110 = arith.constant 0 : index
    %129 = vector.load %arg1[%c0_108, %c6_109, %c0_110] : memref<2x16x16xf32, #tpu.memory_space<vmem>>, vector<2x1x16xf32>
    %130 = vector.shape_cast %129 : vector<2x1x16xf32> to vector<2x16xf32>
    %cst_111 = arith.constant 2.500000e-01 : f32
    %131 = vector.broadcast %cst_111 : f32 to vector<2x16xf32>
    %132 = arith.mulf %130, %131 : vector<2x16xf32>
    %133 = arith.addf %128, %132 : vector<2x16xf32>
    %c0_112 = arith.constant 0 : index
    %c11 = arith.constant 11 : index
    %c0_113 = arith.constant 0 : index
    %134 = vector.load %arg2[%c0_112, %c11, %c0_113] : memref<2x32x16xf32, #tpu.memory_space<vmem>>, vector<2x1x16xf32>
    %135 = vector.shape_cast %134 : vector<2x1x16xf32> to vector<2x16xf32>
    %136 = vector.shape_cast %133 : vector<2x16xf32> to vector<2x1x16xf32>
    tpu.vector_store %arg2[%c0_112, %c11, %c0_113], %136 {strides = array<i32>} : memref<2x32x16xf32, #tpu.memory_space<vmem>>, vector<2x1x16xf32>,
    %c0_114 = arith.constant 0 : index
    %c5_115 = arith.constant 5 : index
    %c0_116 = arith.constant 0 : index
    %137 = vector.load %arg1[%c0_114, %c5_115, %c0_116] : memref<2x16x16xf32, #tpu.memory_space<vmem>>, vector<2x1x16xf32>
    %138 = vector.shape_cast %137 : vector<2x1x16xf32> to vector<2x16xf32>
    %cst_117 = arith.constant 2.500000e-01 : f32
    %139 = vector.broadcast %cst_117 : f32 to vector<2x16xf32>
    %140 = arith.mulf %138, %139 : vector<2x16xf32>
    %c0_118 = arith.constant 0 : index
    %c6_119 = arith.constant 6 : index
    %c0_120 = arith.constant 0 : index
    %141 = vector.load %arg1[%c0_118, %c6_119, %c0_120] : memref<2x16x16xf32, #tpu.memory_space<vmem>>, vector<2x1x16xf32>
    %142 = vector.shape_cast %141 : vector<2x1x16xf32> to vector<2x16xf32>
    %cst_121 = arith.constant 7.500000e-01 : f32
    %143 = vector.broadcast %cst_121 : f32 to vector<2x16xf32>
    %144 = arith.mulf %142, %143 : vector<2x16xf32>
    %145 = arith.addf %140, %144 : vector<2x16xf32>
    %c0_122 = arith.constant 0 : index
    %c12 = arith.constant 12 : index
    %c0_123 = arith.constant 0 : index
    %146 = vector.load %arg2[%c0_122, %c12, %c0_123] : memref<2x32x16xf32, #tpu.memory_space<vmem>>, vector<2x1x16xf32>
    %147 = vector.shape_cast %146 : vector<2x1x16xf32> to vector<2x16xf32>
    %148 = vector.shape_cast %145 : vector<2x16xf32> to vector<2x1x16xf32>
    tpu.vector_store %arg2[%c0_122, %c12, %c0_123], %148 {strides = array<i32>} : memref<2x32x16xf32, #tpu.memory_space<vmem>>, vector<2x1x16xf32>,
    %c0_124 = arith.constant 0 : index
    %c6_125 = arith.constant 6 : index
    %c0_126 = arith.constant 0 : index
    %149 = vector.load %arg1[%c0_124, %c6_125, %c0_126] : memref<2x16x16xf32, #tpu.memory_space<vmem>>, vector<2x1x16xf32>
    %150 = vector.shape_cast %149 : vector<2x1x16xf32> to vector<2x16xf32>
    %cst_127 = arith.constant 7.500000e-01 : f32
    %151 = vector.broadcast %cst_127 : f32 to vector<2x16xf32>
    %152 = arith.mulf %150, %151 : vector<2x16xf32>
    %c0_128 = arith.constant 0 : index
    %c7_129 = arith.constant 7 : index
    %c0_130 = arith.constant 0 : index
    %153 = vector.load %arg1[%c0_128, %c7_129, %c0_130] : memref<2x16x16xf32, #tpu.memory_space<vmem>>, vector<2x1x16xf32>
    %154 = vector.shape_cast %153 : vector<2x1x16xf32> to vector<2x16xf32>
    %cst_131 = arith.constant 2.500000e-01 : f32
    %155 = vector.broadcast %cst_131 : f32 to vector<2x16xf32>
    %156 = arith.mulf %154, %155 : vector<2x16xf32>
    %157 = arith.addf %152, %156 : vector<2x16xf32>
    %c0_132 = arith.constant 0 : index
    %c13 = arith.constant 13 : index
    %c0_133 = arith.constant 0 : index
    %158 = vector.load %arg2[%c0_132, %c13, %c0_133] : memref<2x32x16xf32, #tpu.memory_space<vmem>>, vector<2x1x16xf32>
    %159 = vector.shape_cast %158 : vector<2x1x16xf32> to vector<2x16xf32>
    %160 = vector.shape_cast %157 : vector<2x16xf32> to vector<2x1x16xf32>
    tpu.vector_store %arg2[%c0_132, %c13, %c0_133], %160 {strides = array<i32>} : memref<2x32x16xf32, #tpu.memory_space<vmem>>, vector<2x1x16xf32>,
    %c0_134 = arith.constant 0 : index
    %c6_135 = arith.constant 6 : index
    %c0_136 = arith.constant 0 : index
    %161 = vector.load %arg1[%c0_134, %c6_135, %c0_136] : memref<2x16x16xf32, #tpu.memory_space<vmem>>, vector<2x1x16xf32>
    %162 = vector.shape_cast %161 : vector<2x1x16xf32> to vector<2x16xf32>
    %cst_137 = arith.constant 2.500000e-01 : f32
    %163 = vector.broadcast %cst_137 : f32 to vector<2x16xf32>
    %164 = arith.mulf %162, %163 : vector<2x16xf32>
    %c0_138 = arith.constant 0 : index
    %c7_139 = arith.constant 7 : index
    %c0_140 = arith.constant 0 : index
    %165 = vector.load %arg1[%c0_138, %c7_139, %c0_140] : memref<2x16x16xf32, #tpu.memory_space<vmem>>, vector<2x1x16xf32>
    %166 = vector.shape_cast %165 : vector<2x1x16xf32> to vector<2x16xf32>
    %cst_141 = arith.constant 7.500000e-01 : f32
    %167 = vector.broadcast %cst_141 : f32 to vector<2x16xf32>
    %168 = arith.mulf %166, %167 : vector<2x16xf32>
    %169 = arith.addf %164, %168 : vector<2x16xf32>
    %c0_142 = arith.constant 0 : index
    %c14 = arith.constant 14 : index
    %c0_143 = arith.constant 0 : index
    %170 = vector.load %arg2[%c0_142, %c14, %c0_143] : memref<2x32x16xf32, #tpu.memory_space<vmem>>, vector<2x1x16xf32>
    %171 = vector.shape_cast %170 : vector<2x1x16xf32> to vector<2x16xf32>
    %172 = vector.shape_cast %169 : vector<2x16xf32> to vector<2x1x16xf32>
    tpu.vector_store %arg2[%c0_142, %c14, %c0_143], %172 {strides = array<i32>} : memref<2x32x16xf32, #tpu.memory_space<vmem>>, vector<2x1x16xf32>,
    %c0_144 = arith.constant 0 : index
    %c7_145 = arith.constant 7 : index
    %c0_146 = arith.constant 0 : index
    %173 = vector.load %arg1[%c0_144, %c7_145, %c0_146] : memref<2x16x16xf32, #tpu.memory_space<vmem>>, vector<2x1x16xf32>
    %174 = vector.shape_cast %173 : vector<2x1x16xf32> to vector<2x16xf32>
    %cst_147 = arith.constant 7.500000e-01 : f32
    %175 = vector.broadcast %cst_147 : f32 to vector<2x16xf32>
    %176 = arith.mulf %174, %175 : vector<2x16xf32>
    %c0_148 = arith.constant 0 : index
    %c8_149 = arith.constant 8 : index
    %c0_150 = arith.constant 0 : index
    %177 = vector.load %arg1[%c0_148, %c8_149, %c0_150] : memref<2x16x16xf32, #tpu.memory_space<vmem>>, vector<2x1x16xf32>
    %178 = vector.shape_cast %177 : vector<2x1x16xf32> to vector<2x16xf32>
    %cst_151 = arith.constant 2.500000e-01 : f32
    %179 = vector.broadcast %cst_151 : f32 to vector<2x16xf32>
    %180 = arith.mulf %178, %179 : vector<2x16xf32>
    %181 = arith.addf %176, %180 : vector<2x16xf32>
    %c0_152 = arith.constant 0 : index
    %c15 = arith.constant 15 : index
    %c0_153 = arith.constant 0 : index
    %182 = vector.load %arg2[%c0_152, %c15, %c0_153] : memref<2x32x16xf32, #tpu.memory_space<vmem>>, vector<2x1x16xf32>
    %183 = vector.shape_cast %182 : vector<2x1x16xf32> to vector<2x16xf32>
    %184 = vector.shape_cast %181 : vector<2x16xf32> to vector<2x1x16xf32>
    tpu.vector_store %arg2[%c0_152, %c15, %c0_153], %184 {strides = array<i32>} : memref<2x32x16xf32, #tpu.memory_space<vmem>>, vector<2x1x16xf32>,
    %c0_154 = arith.constant 0 : index
    %c7_155 = arith.constant 7 : index
    %c0_156 = arith.constant 0 : index
    %185 = vector.load %arg1[%c0_154, %c7_155, %c0_156] : memref<2x16x16xf32, #tpu.memory_space<vmem>>, vector<2x1x16xf32>
    %186 = vector.shape_cast %185 : vector<2x1x16xf32> to vector<2x16xf32>
    %cst_157 = arith.constant 2.500000e-01 : f32
    %187 = vector.broadcast %cst_157 : f32 to vector<2x16xf32>
    %188 = arith.mulf %186, %187 : vector<2x16xf32>
    %c0_158 = arith.constant 0 : index
    %c8_159 = arith.constant 8 : index
    %c0_160 = arith.constant 0 : index
    %189 = vector.load %arg1[%c0_158, %c8_159, %c0_160] : memref<2x16x16xf32, #tpu.memory_space<vmem>>, vector<2x1x16xf32>
    %190 = vector.shape_cast %189 : vector<2x1x16xf32> to vector<2x16xf32>
    %cst_161 = arith.constant 7.500000e-01 : f32
    %191 = vector.broadcast %cst_161 : f32 to vector<2x16xf32>
    %192 = arith.mulf %190, %191 : vector<2x16xf32>
    %193 = arith.addf %188, %192 : vector<2x16xf32>
    %c0_162 = arith.constant 0 : index
    %c16 = arith.constant 16 : index
    %c0_163 = arith.constant 0 : index
    %194 = vector.load %arg2[%c0_162, %c16, %c0_163] : memref<2x32x16xf32, #tpu.memory_space<vmem>>, vector<2x1x16xf32>
    %195 = vector.shape_cast %194 : vector<2x1x16xf32> to vector<2x16xf32>
    %196 = vector.shape_cast %193 : vector<2x16xf32> to vector<2x1x16xf32>
    tpu.vector_store %arg2[%c0_162, %c16, %c0_163], %196 {strides = array<i32>} : memref<2x32x16xf32, #tpu.memory_space<vmem>>, vector<2x1x16xf32>,
    %c0_164 = arith.constant 0 : index
    %c8_165 = arith.constant 8 : index
    %c0_166 = arith.constant 0 : index
    %197 = vector.load %arg1[%c0_164, %c8_165, %c0_166] : memref<2x16x16xf32, #tpu.memory_space<vmem>>, vector<2x1x16xf32>
    %198 = vector.shape_cast %197 : vector<2x1x16xf32> to vector<2x16xf32>
    %cst_167 = arith.constant 7.500000e-01 : f32
    %199 = vector.broadcast %cst_167 : f32 to vector<2x16xf32>
    %200 = arith.mulf %198, %199 : vector<2x16xf32>
    %c0_168 = arith.constant 0 : index
    %c9_169 = arith.constant 9 : index
    %c0_170 = arith.constant 0 : index
    %201 = vector.load %arg1[%c0_168, %c9_169, %c0_170] : memref<2x16x16xf32, #tpu.memory_space<vmem>>, vector<2x1x16xf32>
    %202 = vector.shape_cast %201 : vector<2x1x16xf32> to vector<2x16xf32>
    %cst_171 = arith.constant 2.500000e-01 : f32
    %203 = vector.broadcast %cst_171 : f32 to vector<2x16xf32>
    %204 = arith.mulf %202, %203 : vector<2x16xf32>
    %205 = arith.addf %200, %204 : vector<2x16xf32>
    %c0_172 = arith.constant 0 : index
    %c17 = arith.constant 17 : index
    %c0_173 = arith.constant 0 : index
    %206 = vector.load %arg2[%c0_172, %c17, %c0_173] : memref<2x32x16xf32, #tpu.memory_space<vmem>>, vector<2x1x16xf32>
    %207 = vector.shape_cast %206 : vector<2x1x16xf32> to vector<2x16xf32>
    %208 = vector.shape_cast %205 : vector<2x16xf32> to vector<2x1x16xf32>
    tpu.vector_store %arg2[%c0_172, %c17, %c0_173], %208 {strides = array<i32>} : memref<2x32x16xf32, #tpu.memory_space<vmem>>, vector<2x1x16xf32>,
    %c0_174 = arith.constant 0 : index
    %c8_175 = arith.constant 8 : index
    %c0_176 = arith.constant 0 : index
    %209 = vector.load %arg1[%c0_174, %c8_175, %c0_176] : memref<2x16x16xf32, #tpu.memory_space<vmem>>, vector<2x1x16xf32>
    %210 = vector.shape_cast %209 : vector<2x1x16xf32> to vector<2x16xf32>
    %cst_177 = arith.constant 2.500000e-01 : f32
    %211 = vector.broadcast %cst_177 : f32 to vector<2x16xf32>
    %212 = arith.mulf %210, %211 : vector<2x16xf32>
    %c0_178 = arith.constant 0 : index
    %c9_179 = arith.constant 9 : index
    %c0_180 = arith.constant 0 : index
    %213 = vector.load %arg1[%c0_178, %c9_179, %c0_180] : memref<2x16x16xf32, #tpu.memory_space<vmem>>, vector<2x1x16xf32>
    %214 = vector.shape_cast %213 : vector<2x1x16xf32> to vector<2x16xf32>
    %cst_181 = arith.constant 7.500000e-01 : f32
    %215 = vector.broadcast %cst_181 : f32 to vector<2x16xf32>
    %216 = arith.mulf %214, %215 : vector<2x16xf32>
    %217 = arith.addf %212, %216 : vector<2x16xf32>
    %c0_182 = arith.constant 0 : index
    %c18 = arith.constant 18 : index
    %c0_183 = arith.constant 0 : index
    %218 = vector.load %arg2[%c0_182, %c18, %c0_183] : memref<2x32x16xf32, #tpu.memory_space<vmem>>, vector<2x1x16xf32>
    %219 = vector.shape_cast %218 : vector<2x1x16xf32> to vector<2x16xf32>
    %220 = vector.shape_cast %217 : vector<2x16xf32> to vector<2x1x16xf32>
    tpu.vector_store %arg2[%c0_182, %c18, %c0_183], %220 {strides = array<i32>} : memref<2x32x16xf32, #tpu.memory_space<vmem>>, vector<2x1x16xf32>,
    %c0_184 = arith.constant 0 : index
    %c9_185 = arith.constant 9 : index
    %c0_186 = arith.constant 0 : index
    %221 = vector.load %arg1[%c0_184, %c9_185, %c0_186] : memref<2x16x16xf32, #tpu.memory_space<vmem>>, vector<2x1x16xf32>
    %222 = vector.shape_cast %221 : vector<2x1x16xf32> to vector<2x16xf32>
    %cst_187 = arith.constant 7.500000e-01 : f32
    %223 = vector.broadcast %cst_187 : f32 to vector<2x16xf32>
    %224 = arith.mulf %222, %223 : vector<2x16xf32>
    %c0_188 = arith.constant 0 : index
    %c10_189 = arith.constant 10 : index
    %c0_190 = arith.constant 0 : index
    %225 = vector.load %arg1[%c0_188, %c10_189, %c0_190] : memref<2x16x16xf32, #tpu.memory_space<vmem>>, vector<2x1x16xf32>
    %226 = vector.shape_cast %225 : vector<2x1x16xf32> to vector<2x16xf32>
    %cst_191 = arith.constant 2.500000e-01 : f32
    %227 = vector.broadcast %cst_191 : f32 to vector<2x16xf32>
    %228 = arith.mulf %226, %227 : vector<2x16xf32>
    %229 = arith.addf %224, %228 : vector<2x16xf32>
    %c0_192 = arith.constant 0 : index
    %c19 = arith.constant 19 : index
    %c0_193 = arith.constant 0 : index
    %230 = vector.load %arg2[%c0_192, %c19, %c0_193] : memref<2x32x16xf32, #tpu.memory_space<vmem>>, vector<2x1x16xf32>
    %231 = vector.shape_cast %230 : vector<2x1x16xf32> to vector<2x16xf32>
    %232 = vector.shape_cast %229 : vector<2x16xf32> to vector<2x1x16xf32>
    tpu.vector_store %arg2[%c0_192, %c19, %c0_193], %232 {strides = array<i32>} : memref<2x32x16xf32, #tpu.memory_space<vmem>>, vector<2x1x16xf32>,
    %c0_194 = arith.constant 0 : index
    %c9_195 = arith.constant 9 : index
    %c0_196 = arith.constant 0 : index
    %233 = vector.load %arg1[%c0_194, %c9_195, %c0_196] : memref<2x16x16xf32, #tpu.memory_space<vmem>>, vector<2x1x16xf32>
    %234 = vector.shape_cast %233 : vector<2x1x16xf32> to vector<2x16xf32>
    %cst_197 = arith.constant 2.500000e-01 : f32
    %235 = vector.broadcast %cst_197 : f32 to vector<2x16xf32>
    %236 = arith.mulf %234, %235 : vector<2x16xf32>
    %c0_198 = arith.constant 0 : index
    %c10_199 = arith.constant 10 : index
    %c0_200 = arith.constant 0 : index
    %237 = vector.load %arg1[%c0_198, %c10_199, %c0_200] : memref<2x16x16xf32, #tpu.memory_space<vmem>>, vector<2x1x16xf32>
    %238 = vector.shape_cast %237 : vector<2x1x16xf32> to vector<2x16xf32>
    %cst_201 = arith.constant 7.500000e-01 : f32
    %239 = vector.broadcast %cst_201 : f32 to vector<2x16xf32>
    %240 = arith.mulf %238, %239 : vector<2x16xf32>
    %241 = arith.addf %236, %240 : vector<2x16xf32>
    %c0_202 = arith.constant 0 : index
    %c20 = arith.constant 20 : index
    %c0_203 = arith.constant 0 : index
    %242 = vector.load %arg2[%c0_202, %c20, %c0_203] : memref<2x32x16xf32, #tpu.memory_space<vmem>>, vector<2x1x16xf32>
    %243 = vector.shape_cast %242 : vector<2x1x16xf32> to vector<2x16xf32>
    %244 = vector.shape_cast %241 : vector<2x16xf32> to vector<2x1x16xf32>
    tpu.vector_store %arg2[%c0_202, %c20, %c0_203], %244 {strides = array<i32>} : memref<2x32x16xf32, #tpu.memory_space<vmem>>, vector<2x1x16xf32>,
    %c0_204 = arith.constant 0 : index
    %c10_205 = arith.constant 10 : index
    %c0_206 = arith.constant 0 : index
    %245 = vector.load %arg1[%c0_204, %c10_205, %c0_206] : memref<2x16x16xf32, #tpu.memory_space<vmem>>, vector<2x1x16xf32>
    %246 = vector.shape_cast %245 : vector<2x1x16xf32> to vector<2x16xf32>
    %cst_207 = arith.constant 7.500000e-01 : f32
    %247 = vector.broadcast %cst_207 : f32 to vector<2x16xf32>
    %248 = arith.mulf %246, %247 : vector<2x16xf32>
    %c0_208 = arith.constant 0 : index
    %c11_209 = arith.constant 11 : index
    %c0_210 = arith.constant 0 : index
    %249 = vector.load %arg1[%c0_208, %c11_209, %c0_210] : memref<2x16x16xf32, #tpu.memory_space<vmem>>, vector<2x1x16xf32>
    %250 = vector.shape_cast %249 : vector<2x1x16xf32> to vector<2x16xf32>
    %cst_211 = arith.constant 2.500000e-01 : f32
    %251 = vector.broadcast %cst_211 : f32 to vector<2x16xf32>
    %252 = arith.mulf %250, %251 : vector<2x16xf32>
    %253 = arith.addf %248, %252 : vector<2x16xf32>
    %c0_212 = arith.constant 0 : index
    %c21 = arith.constant 21 : index
    %c0_213 = arith.constant 0 : index
    %254 = vector.load %arg2[%c0_212, %c21, %c0_213] : memref<2x32x16xf32, #tpu.memory_space<vmem>>, vector<2x1x16xf32>
    %255 = vector.shape_cast %254 : vector<2x1x16xf32> to vector<2x16xf32>
    %256 = vector.shape_cast %253 : vector<2x16xf32> to vector<2x1x16xf32>
    tpu.vector_store %arg2[%c0_212, %c21, %c0_213], %256 {strides = array<i32>} : memref<2x32x16xf32, #tpu.memory_space<vmem>>, vector<2x1x16xf32>,
    %c0_214 = arith.constant 0 : index
    %c10_215 = arith.constant 10 : index
    %c0_216 = arith.constant 0 : index
    %257 = vector.load %arg1[%c0_214, %c10_215, %c0_216] : memref<2x16x16xf32, #tpu.memory_space<vmem>>, vector<2x1x16xf32>
    %258 = vector.shape_cast %257 : vector<2x1x16xf32> to vector<2x16xf32>
    %cst_217 = arith.constant 2.500000e-01 : f32
    %259 = vector.broadcast %cst_217 : f32 to vector<2x16xf32>
    %260 = arith.mulf %258, %259 : vector<2x16xf32>
    %c0_218 = arith.constant 0 : index
    %c11_219 = arith.constant 11 : index
    %c0_220 = arith.constant 0 : index
    %261 = vector.load %arg1[%c0_218, %c11_219, %c0_220] : memref<2x16x16xf32, #tpu.memory_space<vmem>>, vector<2x1x16xf32>
    %262 = vector.shape_cast %261 : vector<2x1x16xf32> to vector<2x16xf32>
    %cst_221 = arith.constant 7.500000e-01 : f32
    %263 = vector.broadcast %cst_221 : f32 to vector<2x16xf32>
    %264 = arith.mulf %262, %263 : vector<2x16xf32>
    %265 = arith.addf %260, %264 : vector<2x16xf32>
    %c0_222 = arith.constant 0 : index
    %c22 = arith.constant 22 : index
    %c0_223 = arith.constant 0 : index
    %266 = vector.load %arg2[%c0_222, %c22, %c0_223] : memref<2x32x16xf32, #tpu.memory_space<vmem>>, vector<2x1x16xf32>
    %267 = vector.shape_cast %266 : vector<2x1x16xf32> to vector<2x16xf32>
    %268 = vector.shape_cast %265 : vector<2x16xf32> to vector<2x1x16xf32>
    tpu.vector_store %arg2[%c0_222, %c22, %c0_223], %268 {strides = array<i32>} : memref<2x32x16xf32, #tpu.memory_space<vmem>>, vector<2x1x16xf32>,
    %c0_224 = arith.constant 0 : index
    %c11_225 = arith.constant 11 : index
    %c0_226 = arith.constant 0 : index
    %269 = vector.load %arg1[%c0_224, %c11_225, %c0_226] : memref<2x16x16xf32, #tpu.memory_space<vmem>>, vector<2x1x16xf32>
    %270 = vector.shape_cast %269 : vector<2x1x16xf32> to vector<2x16xf32>
    %cst_227 = arith.constant 7.500000e-01 : f32
    %271 = vector.broadcast %cst_227 : f32 to vector<2x16xf32>
    %272 = arith.mulf %270, %271 : vector<2x16xf32>
    %c0_228 = arith.constant 0 : index
    %c12_229 = arith.constant 12 : index
    %c0_230 = arith.constant 0 : index
    %273 = vector.load %arg1[%c0_228, %c12_229, %c0_230] : memref<2x16x16xf32, #tpu.memory_space<vmem>>, vector<2x1x16xf32>
    %274 = vector.shape_cast %273 : vector<2x1x16xf32> to vector<2x16xf32>
    %cst_231 = arith.constant 2.500000e-01 : f32
    %275 = vector.broadcast %cst_231 : f32 to vector<2x16xf32>
    %276 = arith.mulf %274, %275 : vector<2x16xf32>
    %277 = arith.addf %272, %276 : vector<2x16xf32>
    %c0_232 = arith.constant 0 : index
    %c23 = arith.constant 23 : index
    %c0_233 = arith.constant 0 : index
    %278 = vector.load %arg2[%c0_232, %c23, %c0_233] : memref<2x32x16xf32, #tpu.memory_space<vmem>>, vector<2x1x16xf32>
    %279 = vector.shape_cast %278 : vector<2x1x16xf32> to vector<2x16xf32>
    %280 = vector.shape_cast %277 : vector<2x16xf32> to vector<2x1x16xf32>
    tpu.vector_store %arg2[%c0_232, %c23, %c0_233], %280 {strides = array<i32>} : memref<2x32x16xf32, #tpu.memory_space<vmem>>, vector<2x1x16xf32>,
    %c0_234 = arith.constant 0 : index
    %c11_235 = arith.constant 11 : index
    %c0_236 = arith.constant 0 : index
    %281 = vector.load %arg1[%c0_234, %c11_235, %c0_236] : memref<2x16x16xf32, #tpu.memory_space<vmem>>, vector<2x1x16xf32>
    %282 = vector.shape_cast %281 : vector<2x1x16xf32> to vector<2x16xf32>
    %cst_237 = arith.constant 2.500000e-01 : f32
    %283 = vector.broadcast %cst_237 : f32 to vector<2x16xf32>
    %284 = arith.mulf %282, %283 : vector<2x16xf32>
    %c0_238 = arith.constant 0 : index
    %c12_239 = arith.constant 12 : index
    %c0_240 = arith.constant 0 : index
    %285 = vector.load %arg1[%c0_238, %c12_239, %c0_240] : memref<2x16x16xf32, #tpu.memory_space<vmem>>, vector<2x1x16xf32>
    %286 = vector.shape_cast %285 : vector<2x1x16xf32> to vector<2x16xf32>
    %cst_241 = arith.constant 7.500000e-01 : f32
    %287 = vector.broadcast %cst_241 : f32 to vector<2x16xf32>
    %288 = arith.mulf %286, %287 : vector<2x16xf32>
    %289 = arith.addf %284, %288 : vector<2x16xf32>
    %c0_242 = arith.constant 0 : index
    %c24 = arith.constant 24 : index
    %c0_243 = arith.constant 0 : index
    %290 = vector.load %arg2[%c0_242, %c24, %c0_243] : memref<2x32x16xf32, #tpu.memory_space<vmem>>, vector<2x1x16xf32>
    %291 = vector.shape_cast %290 : vector<2x1x16xf32> to vector<2x16xf32>
    %292 = vector.shape_cast %289 : vector<2x16xf32> to vector<2x1x16xf32>
    tpu.vector_store %arg2[%c0_242, %c24, %c0_243], %292 {strides = array<i32>} : memref<2x32x16xf32, #tpu.memory_space<vmem>>, vector<2x1x16xf32>,
    %c0_244 = arith.constant 0 : index
    %c12_245 = arith.constant 12 : index
    %c0_246 = arith.constant 0 : index
    %293 = vector.load %arg1[%c0_244, %c12_245, %c0_246] : memref<2x16x16xf32, #tpu.memory_space<vmem>>, vector<2x1x16xf32>
    %294 = vector.shape_cast %293 : vector<2x1x16xf32> to vector<2x16xf32>
    %cst_247 = arith.constant 7.500000e-01 : f32
    %295 = vector.broadcast %cst_247 : f32 to vector<2x16xf32>
    %296 = arith.mulf %294, %295 : vector<2x16xf32>
    %c0_248 = arith.constant 0 : index
    %c13_249 = arith.constant 13 : index
    %c0_250 = arith.constant 0 : index
    %297 = vector.load %arg1[%c0_248, %c13_249, %c0_250] : memref<2x16x16xf32, #tpu.memory_space<vmem>>, vector<2x1x16xf32>
    %298 = vector.shape_cast %297 : vector<2x1x16xf32> to vector<2x16xf32>
    %cst_251 = arith.constant 2.500000e-01 : f32
    %299 = vector.broadcast %cst_251 : f32 to vector<2x16xf32>
    %300 = arith.mulf %298, %299 : vector<2x16xf32>
    %301 = arith.addf %296, %300 : vector<2x16xf32>
    %c0_252 = arith.constant 0 : index
    %c25 = arith.constant 25 : index
    %c0_253 = arith.constant 0 : index
    %302 = vector.load %arg2[%c0_252, %c25, %c0_253] : memref<2x32x16xf32, #tpu.memory_space<vmem>>, vector<2x1x16xf32>
    %303 = vector.shape_cast %302 : vector<2x1x16xf32> to vector<2x16xf32>
    %304 = vector.shape_cast %301 : vector<2x16xf32> to vector<2x1x16xf32>
    tpu.vector_store %arg2[%c0_252, %c25, %c0_253], %304 {strides = array<i32>} : memref<2x32x16xf32, #tpu.memory_space<vmem>>, vector<2x1x16xf32>,
    %c0_254 = arith.constant 0 : index
    %c12_255 = arith.constant 12 : index
    %c0_256 = arith.constant 0 : index
    %305 = vector.load %arg1[%c0_254, %c12_255, %c0_256] : memref<2x16x16xf32, #tpu.memory_space<vmem>>, vector<2x1x16xf32>
    %306 = vector.shape_cast %305 : vector<2x1x16xf32> to vector<2x16xf32>
    %cst_257 = arith.constant 2.500000e-01 : f32
    %307 = vector.broadcast %cst_257 : f32 to vector<2x16xf32>
    %308 = arith.mulf %306, %307 : vector<2x16xf32>
    %c0_258 = arith.constant 0 : index
    %c13_259 = arith.constant 13 : index
    %c0_260 = arith.constant 0 : index
    %309 = vector.load %arg1[%c0_258, %c13_259, %c0_260] : memref<2x16x16xf32, #tpu.memory_space<vmem>>, vector<2x1x16xf32>
    %310 = vector.shape_cast %309 : vector<2x1x16xf32> to vector<2x16xf32>
    %cst_261 = arith.constant 7.500000e-01 : f32
    %311 = vector.broadcast %cst_261 : f32 to vector<2x16xf32>
    %312 = arith.mulf %310, %311 : vector<2x16xf32>
    %313 = arith.addf %308, %312 : vector<2x16xf32>
    %c0_262 = arith.constant 0 : index
    %c26 = arith.constant 26 : index
    %c0_263 = arith.constant 0 : index
    %314 = vector.load %arg2[%c0_262, %c26, %c0_263] : memref<2x32x16xf32, #tpu.memory_space<vmem>>, vector<2x1x16xf32>
    %315 = vector.shape_cast %314 : vector<2x1x16xf32> to vector<2x16xf32>
    %316 = vector.shape_cast %313 : vector<2x16xf32> to vector<2x1x16xf32>
    tpu.vector_store %arg2[%c0_262, %c26, %c0_263], %316 {strides = array<i32>} : memref<2x32x16xf32, #tpu.memory_space<vmem>>, vector<2x1x16xf32>,
    %c0_264 = arith.constant 0 : index
    %c13_265 = arith.constant 13 : index
    %c0_266 = arith.constant 0 : index
    %317 = vector.load %arg1[%c0_264, %c13_265, %c0_266] : memref<2x16x16xf32, #tpu.memory_space<vmem>>, vector<2x1x16xf32>
    %318 = vector.shape_cast %317 : vector<2x1x16xf32> to vector<2x16xf32>
    %cst_267 = arith.constant 7.500000e-01 : f32
    %319 = vector.broadcast %cst_267 : f32 to vector<2x16xf32>
    %320 = arith.mulf %318, %319 : vector<2x16xf32>
    %c0_268 = arith.constant 0 : index
    %c14_269 = arith.constant 14 : index
    %c0_270 = arith.constant 0 : index
    %321 = vector.load %arg1[%c0_268, %c14_269, %c0_270] : memref<2x16x16xf32, #tpu.memory_space<vmem>>, vector<2x1x16xf32>
    %322 = vector.shape_cast %321 : vector<2x1x16xf32> to vector<2x16xf32>
    %cst_271 = arith.constant 2.500000e-01 : f32
    %323 = vector.broadcast %cst_271 : f32 to vector<2x16xf32>
    %324 = arith.mulf %322, %323 : vector<2x16xf32>
    %325 = arith.addf %320, %324 : vector<2x16xf32>
    %c0_272 = arith.constant 0 : index
    %c27 = arith.constant 27 : index
    %c0_273 = arith.constant 0 : index
    %326 = vector.load %arg2[%c0_272, %c27, %c0_273] : memref<2x32x16xf32, #tpu.memory_space<vmem>>, vector<2x1x16xf32>
    %327 = vector.shape_cast %326 : vector<2x1x16xf32> to vector<2x16xf32>
    %328 = vector.shape_cast %325 : vector<2x16xf32> to vector<2x1x16xf32>
    tpu.vector_store %arg2[%c0_272, %c27, %c0_273], %328 {strides = array<i32>} : memref<2x32x16xf32, #tpu.memory_space<vmem>>, vector<2x1x16xf32>,
    %c0_274 = arith.constant 0 : index
    %c13_275 = arith.constant 13 : index
    %c0_276 = arith.constant 0 : index
    %329 = vector.load %arg1[%c0_274, %c13_275, %c0_276] : memref<2x16x16xf32, #tpu.memory_space<vmem>>, vector<2x1x16xf32>
    %330 = vector.shape_cast %329 : vector<2x1x16xf32> to vector<2x16xf32>
    %cst_277 = arith.constant 2.500000e-01 : f32
    %331 = vector.broadcast %cst_277 : f32 to vector<2x16xf32>
    %332 = arith.mulf %330, %331 : vector<2x16xf32>
    %c0_278 = arith.constant 0 : index
    %c14_279 = arith.constant 14 : index
    %c0_280 = arith.constant 0 : index
    %333 = vector.load %arg1[%c0_278, %c14_279, %c0_280] : memref<2x16x16xf32, #tpu.memory_space<vmem>>, vector<2x1x16xf32>
    %334 = vector.shape_cast %333 : vector<2x1x16xf32> to vector<2x16xf32>
    %cst_281 = arith.constant 7.500000e-01 : f32
    %335 = vector.broadcast %cst_281 : f32 to vector<2x16xf32>
    %336 = arith.mulf %334, %335 : vector<2x16xf32>
    %337 = arith.addf %332, %336 : vector<2x16xf32>
    %c0_282 = arith.constant 0 : index
    %c28 = arith.constant 28 : index
    %c0_283 = arith.constant 0 : index
    %338 = vector.load %arg2[%c0_282, %c28, %c0_283] : memref<2x32x16xf32, #tpu.memory_space<vmem>>, vector<2x1x16xf32>
    %339 = vector.shape_cast %338 : vector<2x1x16xf32> to vector<2x16xf32>
    %340 = vector.shape_cast %337 : vector<2x16xf32> to vector<2x1x16xf32>
    tpu.vector_store %arg2[%c0_282, %c28, %c0_283], %340 {strides = array<i32>} : memref<2x32x16xf32, #tpu.memory_space<vmem>>, vector<2x1x16xf32>,
    %c0_284 = arith.constant 0 : index
    %c14_285 = arith.constant 14 : index
    %c0_286 = arith.constant 0 : index
    %341 = vector.load %arg1[%c0_284, %c14_285, %c0_286] : memref<2x16x16xf32, #tpu.memory_space<vmem>>, vector<2x1x16xf32>
    %342 = vector.shape_cast %341 : vector<2x1x16xf32> to vector<2x16xf32>
    %cst_287 = arith.constant 7.500000e-01 : f32
    %343 = vector.broadcast %cst_287 : f32 to vector<2x16xf32>
    %344 = arith.mulf %342, %343 : vector<2x16xf32>
    %c0_288 = arith.constant 0 : index
    %c15_289 = arith.constant 15 : index
    %c0_290 = arith.constant 0 : index
    %345 = vector.load %arg1[%c0_288, %c15_289, %c0_290] : memref<2x16x16xf32, #tpu.memory_space<vmem>>, vector<2x1x16xf32>
    %346 = vector.shape_cast %345 : vector<2x1x16xf32> to vector<2x16xf32>
    %cst_291 = arith.constant 2.500000e-01 : f32
    %347 = vector.broadcast %cst_291 : f32 to vector<2x16xf32>
    %348 = arith.mulf %346, %347 : vector<2x16xf32>
    %349 = arith.addf %344, %348 : vector<2x16xf32>
    %c0_292 = arith.constant 0 : index
    %c29 = arith.constant 29 : index
    %c0_293 = arith.constant 0 : index
    %350 = vector.load %arg2[%c0_292, %c29, %c0_293] : memref<2x32x16xf32, #tpu.memory_space<vmem>>, vector<2x1x16xf32>
    %351 = vector.shape_cast %350 : vector<2x1x16xf32> to vector<2x16xf32>
    %352 = vector.shape_cast %349 : vector<2x16xf32> to vector<2x1x16xf32>
    tpu.vector_store %arg2[%c0_292, %c29, %c0_293], %352 {strides = array<i32>} : memref<2x32x16xf32, #tpu.memory_space<vmem>>, vector<2x1x16xf32>,
    %c0_294 = arith.constant 0 : index
    %c14_295 = arith.constant 14 : index
    %c0_296 = arith.constant 0 : index
    %353 = vector.load %arg1[%c0_294, %c14_295, %c0_296] : memref<2x16x16xf32, #tpu.memory_space<vmem>>, vector<2x1x16xf32>
    %354 = vector.shape_cast %353 : vector<2x1x16xf32> to vector<2x16xf32>
    %cst_297 = arith.constant 2.500000e-01 : f32
    %355 = vector.broadcast %cst_297 : f32 to vector<2x16xf32>
    %356 = arith.mulf %354, %355 : vector<2x16xf32>
    %c0_298 = arith.constant 0 : index
    %c15_299 = arith.constant 15 : index
    %c0_300 = arith.constant 0 : index
    %357 = vector.load %arg1[%c0_298, %c15_299, %c0_300] : memref<2x16x16xf32, #tpu.memory_space<vmem>>, vector<2x1x16xf32>
    %358 = vector.shape_cast %357 : vector<2x1x16xf32> to vector<2x16xf32>
    %cst_301 = arith.constant 7.500000e-01 : f32
    %359 = vector.broadcast %cst_301 : f32 to vector<2x16xf32>
    %360 = arith.mulf %358, %359 : vector<2x16xf32>
    %361 = arith.addf %356, %360 : vector<2x16xf32>
    %c0_302 = arith.constant 0 : index
    %c30 = arith.constant 30 : index
    %c0_303 = arith.constant 0 : index
    %362 = vector.load %arg2[%c0_302, %c30, %c0_303] : memref<2x32x16xf32, #tpu.memory_space<vmem>>, vector<2x1x16xf32>
    %363 = vector.shape_cast %362 : vector<2x1x16xf32> to vector<2x16xf32>
    %364 = vector.shape_cast %361 : vector<2x16xf32> to vector<2x1x16xf32>
    tpu.vector_store %arg2[%c0_302, %c30, %c0_303], %364 {strides = array<i32>} : memref<2x32x16xf32, #tpu.memory_space<vmem>>, vector<2x1x16xf32>,
    %c0_304 = arith.constant 0 : index
    %c15_305 = arith.constant 15 : index
    %c0_306 = arith.constant 0 : index
    %365 = vector.load %arg1[%c0_304, %c15_305, %c0_306] : memref<2x16x16xf32, #tpu.memory_space<vmem>>, vector<2x1x16xf32>
    %366 = vector.shape_cast %365 : vector<2x1x16xf32> to vector<2x16xf32>
    %c0_307 = arith.constant 0 : index
    %c31 = arith.constant 31 : index
    %c0_308 = arith.constant 0 : index
    %367 = vector.load %arg2[%c0_307, %c31, %c0_308] : memref<2x32x16xf32, #tpu.memory_space<vmem>>, vector<2x1x16xf32>
    %368 = vector.shape_cast %367 : vector<2x1x16xf32> to vector<2x16xf32>
    %369 = vector.shape_cast %366 : vector<2x16xf32> to vector<2x1x16xf32>
    tpu.vector_store %arg2[%c0_307, %c31, %c0_308], %369 {strides = array<i32>} : memref<2x32x16xf32, #tpu.memory_space<vmem>>, vector<2x1x16xf32>,
    return
  }
  func.func @transform_0(%arg0: i32) -> (i32, i32, i32) {
    %c0_i32 = arith.constant 0 : i32
    %c0_i32_0 = arith.constant 0 : i32
    %c0_i32_1 = arith.constant 0 : i32
    return %arg0, %c0_i32, %c0_i32_0 : i32, i32, i32
  }
  func.func @transform_1(%arg0: i32) -> (i32, i32, i32) {
    %c0_i32 = arith.constant 0 : i32
    %c0_i32_0 = arith.constant 0 : i32
    %c0_i32_1 = arith.constant 0 : i32
    return %arg0, %c0_i32, %c0_i32_0 : i32, i32, i32
  }
}

</mosaic_0001>

<llo_original>
// kernel: tpu_custom_call.1
$region0: #{tpu_custom_call.1}
  #allocation0 [shape = 'u32[]', space=smem, size = 0x4, offset = 0x4, fixed_abs, tag = 'smem constant byte address 0x4 - core index']
  #allocation1 [shape = 'u32[144,128]{1,0:T(1,128)}', space=vmem, size = 0x12000, scoped, tag = 'internal scratch']
  %s0 = inlined_call_operand.hbm [shape: f32[8,16,16], index: 0, kind: input, shape index: {}]
  %s1 = inlined_call_operand.vmem [shape: f32[8,32,16], index: 1, kind: output, shape index: {}]
  %s2 = sld [smem:[#allocation0]]
  $region41: #{tpu_custom_call.1} parent=0
    _
  %s4 = ssub.s32 1, %s2
  %s5 = scalar_select 0, %s4, %s2
  $region1: #{tpu_custom_call.1} parent=0
    #allocation2 [shape = 'u8[32768]{0}', space=vmem, size = 0x8000, scoped, tag = 'input window, operand 0']
    #allocation3 [shape = 's32[2]{0}', space=sflag, size = 0x8, scoped, tag = 'scoped memory for tpu_custom_call.1']
    %6 = vsyncpa [#allocation3], 0
    %s7 = scalar_lea.sflag [#allocation3], 1
    %8 = vsyncpa %s7, 0
    loop: start=0, step=1, limit=6
    $region2: #{tpu_custom_call.1} parent=1 // loop_pre_header
      _
    $region3: #{tpu_custom_call.1} parent=1 // loop_header
      %s10 = sphi 0, %s14
      %p11 = scmp.ge.s32.totalorder %s10, 6
      %s20 = sphi 0, %s22
      %s23 = sphi 0, %s20
      %s24 = sphi 0, %s23
      %s40 = sphi 0, %s24
      %s46 = sphi 0, %s48
      %s49 = sphi 0, %s46
      %s50 = sphi 0, %s49
      %s66 = sphi 0, %s50
    $region4: #{tpu_custom_call.1} parent=1 // loop_header_branch
      %13 = sbr.rel (%p11) target = $region8
    $region5: #{tpu_custom_call.1} parent=1 // loop_body
      %s15 = ssub.s32 %s10, 1
      %s16 = ssub.s32 %s10, 2
      %s17 = sadd.s32 %s10, 1
      %s18 = ssub.s32 %s10, %s17
      %p19 = scmp.eq.s32.totalorder %s18, 0
      %s21 = sadd.s32 %s20, 1
      %s22 = scalar_select %p19, %s20, %s21
      %p25 = pneg %p19
      %p26 = scmp.eq.s32.totalorder %s10, 3
      %p27 = por %p25, %p26
      %p28 = scmp.ne.s32.totalorder %s20, %s23
      %p29 = scmp.eq.s32.totalorder %s10, 0
      %p30 = por %p28, %p29
      %p31 = scmp.ne.s32.totalorder %s20, %s23
      %p32 = scmp.eq.s32.totalorder %s15, 3
      %p33 = por %p31, %p32
      %p34 = scmp.ne.s32.totalorder %s23, %s24
      %p35 = scmp.eq.s32.totalorder %s15, 0
      %p36 = por %p34, %p35
      %p37 = scmp.ne.s32.totalorder %s23, %s24
      %p38 = scmp.eq.s32.totalorder %s16, 3
      %p39 = por %p37, %p38
      %p41 = scmp.ne.s32.totalorder %s24, %s40
      %p42 = scmp.eq.s32.totalorder %s16, 0
      %p43 = por %p41, %p42
      %s44 = ssub.s32 %s10, %s17
      %p45 = scmp.eq.s32.totalorder %s44, 0
      %s47 = sadd.s32 %s46, 1
      %s48 = scalar_select %p45, %s46, %s47
      %p51 = pneg %p45
      %p52 = scmp.eq.s32.totalorder %s10, 3
      %p53 = por %p51, %p52
      %p54 = scmp.ne.s32.totalorder %s46, %s49
      %p55 = scmp.eq.s32.totalorder %s10, 0
      %p56 = por %p54, %p55
      %p57 = scmp.ne.s32.totalorder %s46, %s49
      %p58 = scmp.eq.s32.totalorder %s15, 3
      %p59 = por %p57, %p58
      %p60 = scmp.ne.s32.totalorder %s49, %s50
      %p61 = scmp.eq.s32.totalorder %s15, 0
      %p62 = por %p60, %p61
      %p63 = scmp.ne.s32.totalorder %s49, %s50
      %p64 = scmp.eq.s32.totalorder %s16, 3
      %p65 = por %p63, %p64
      %p67 = scmp.ne.s32.totalorder %s50, %s66
      %p68 = scmp.eq.s32.totalorder %s16, 0
      %p69 = por %p67, %p68
      %p70 = scmp.le.s32.totalorder 1, %s10
      %p71 = scmp.lt.s32.totalorder %s10, 5
      %p72 = pnand %p70, %p71
      %p73 = pneg %p72
      // Predicated region
      $region9: #{tpu_custom_call.1} parent=5 // pred_check
        _
      $region10: #{tpu_custom_call.1} parent=5 // pred_check_branch
        %75 = sbr.rel (%p72) target = $region12
      $region11: #{tpu_custom_call.1} parent=5 // pred_region
        %s76 = ssub.s32 %s10, 1
      $region12: #{tpu_custom_call.1} parent=5 // pred_fallthru
        _
      %p77 = scmp.lt.s32.totalorder %s10, 4
      // Predicated region
      $region13: #{tpu_custom_call.1} parent=5 // pred_check
        %p78 = pneg %p77
      $region14: #{tpu_custom_call.1} parent=5 // pred_check_branch
        %80 = sbr.rel (%p78) target = $region16
      $region15: #{tpu_custom_call.1} parent=5 // pred_region
        // Predicated region
        $region17: #{tpu_custom_call.1} parent=15 // pred_check
          %p81 = pneg %p30
        $region18: #{tpu_custom_call.1} parent=15 // pred_check_branch
          %83 = sbr.rel (%p81) target = $region20
        $region19: #{tpu_custom_call.1} parent=15 // pred_region
          %s84 = sand.u32 %s20, 1
          %s85 = scalar_lea.sflag [#allocation3], %s84
          %s86 = sand.u32 %s20, 1
          %s87 = smul.addr %s86, 32
          %s88 = scalar_lea.vmem [#allocation2], %s87
          %s89 = smul.u32 2, %s10
          %s91 = ssub.s32 512, 512
          %92 = vsyncadd %s85, %s91
          %s93 = smul.addr %s89, 2
          %s94 = smul.addr %s93, 128
          %s95 = scalar_lea.hbm %s0, %s94
          %s96 = sshll.u32 %s88, 4
          %s97 = int_to_ptr.vmem [resolvable:$true] %s96
          %102 = dma.hbm_to_vmem [thread:$0]  %s95, 512, %s97, %s85, 128, 128, 8
        $region20: #{tpu_custom_call.1} parent=15 // pred_fallthru
          _
      $region16: #{tpu_custom_call.1} parent=5 // pred_fallthru
        _
      %p103 = scmp.le.s32.totalorder 1, %s10
      %p104 = scmp.lt.s32.totalorder %s10, 5
      %p105 = pnand %p103, %p104
      %p106 = pneg %p105
      // Predicated region
      $region21: #{tpu_custom_call.1} parent=5 // pred_check
        _
      $region22: #{tpu_custom_call.1} parent=5 // pred_check_branch
        %108 = sbr.rel (%p105) target = $region24
      $region23: #{tpu_custom_call.1} parent=5 // pred_region
        %s109 = ssub.s32 %s10, 1
        %s110 = sand.u32 %s23, 1
        %s111 = scalar_lea.sflag [#allocation3], %s110
        %s112 = sand.u32 %s23, 1
        %s113 = smul.addr %s112, 32
        %s114 = scalar_lea.vmem [#allocation2], %s113
        // Predicated region
        $region25: #{tpu_custom_call.1} parent=23 // pred_check
          %p115 = pneg %p36
        $region26: #{tpu_custom_call.1} parent=23 // pred_check_branch
          %117 = sbr.rel (%p115) target = $region28
        $region27: #{tpu_custom_call.1} parent=23 // pred_region
          %118 = dma.done %s111, 512
        $region28: #{tpu_custom_call.1} parent=23 // pred_fallthru
          _
        %s119 = sand.u32 %s23, 1
        %s120 = scalar_lea.sflag [#allocation3], %s119
        %s121 = sand.u32 %s23, 1
        %s122 = smul.addr %s121, 32
        %s123 = scalar_lea.vmem [#allocation2], %s122
        %p124 = pneg %p36
        %p125 = pneg %p33
        %p126 = pneg %p62
        %p127 = pneg %p59
        %s128 = smul.u32 2, %s15
        %p129 = scmp.lt.s32.totalorder %s128, 7
        %s130 = scalar_select %p129, %s128, 7
        %s131 = smul.addr %s130, 4
        %s132 = smul.addr %s131, 8
        %s133 = scalar_lea.vmem %s1, %s132
        %s134 = smul.u32 2, %s15
        %s135 = smul.u32 2, %s15
        %p136 = scmp.lt.s32.totalorder %s135, 7
        %s137 = scalar_select %p136, %s135, 7
        %s138 = smul.addr %s137, 4
        %s139 = smul.addr %s138, 8
        %s140 = scalar_lea.vmem %s1, %s139
        %s141 = smul.u32 2, %s15
        %v142 = vld [vmem:[%s114] sm:$0x1]
        %v143 = vld [vmem:[%s114 + $0x10] sm:$0x1]
        %vm144 = vcmask 122880
        %145 = vst.msk [vmem:[%s140] sm:$0x1] %vm144, %v142
        %146 = vst.msk [vmem:[%s140 + $0x20] sm:$0x1] %vm144, %v143
        %v147 = vld [vmem:[%s114] sm:$0x1]
        %v148 = vld [vmem:[%s114 + $0x10] sm:$0x1]
        %v149 = vmul.f32 %v147, 0.75
        %v150 = vmul.f32 %v148, 0.75
        %v151 = vld [vmem:[%s114 + $0x1] sm:$0x1]
        %v152 = vld [vmem:[%s114 + $0x11] sm:$0x1]
        %v153 = vmul.f32 %v151, 0.25
        %v154 = vmul.f32 %v152, 0.25
        %v155 = vadd.f32 %v149, %v153
        %v156 = vadd.f32 %v150, %v154
        %157 = vst.msk [vmem:[%s140 + $0x1] sm:$0x1] %vm144, %v155
        %158 = vst.msk [vmem:[%s140 + $0x21] sm:$0x1] %vm144, %v156
        %v159 = vld [vmem:[%s114] sm:$0x1]
        %v160 = vld [vmem:[%s114 + $0x10] sm:$0x1]
        %v161 = vmul.f32 %v159, 0.25
        %v162 = vmul.f32 %v160, 0.25
        %v163 = vld [vmem:[%s114 + $0x1] sm:$0x1]
        %v164 = vld [vmem:[%s114 + $0x11] sm:$0x1]
        %v165 = vmul.f32 %v163, 0.75
        %v166 = vmul.f32 %v164, 0.75
        %v167 = vadd.f32 %v161, %v165
        %v168 = vadd.f32 %v162, %v166
        %169 = vst.msk [vmem:[%s140 + $0x2] sm:$0x1] %vm144, %v167
        %170 = vst.msk [vmem:[%s140 + $0x22] sm:$0x1] %vm144, %v168
        %v171 = vld [vmem:[%s114 + $0x1] sm:$0x1]
        %v172 = vld [vmem:[%s114 + $0x11] sm:$0x1]
        %v173 = vmul.f32 %v171, 0.75
        %v174 = vmul.f32 %v172, 0.75
        %v175 = vld [vmem:[%s114 + $0x2] sm:$0x1]
        %v176 = vld [vmem:[%s114 + $0x12] sm:$0x1]
        %v177 = vmul.f32 %v175, 0.25
        %v178 = vmul.f32 %v176, 0.25
        %v179 = vadd.f32 %v173, %v177
        %v180 = vadd.f32 %v174, %v178
        %181 = vst.msk [vmem:[%s140 + $0x3] sm:$0x1] %vm144, %v179
        %182 = vst.msk [vmem:[%s140 + $0x23] sm:$0x1] %vm144, %v180
        %v183 = vld [vmem:[%s114 + $0x1] sm:$0x1]
        %v184 = vld [vmem:[%s114 + $0x11] sm:$0x1]
        %v185 = vmul.f32 %v183, 0.25
        %v186 = vmul.f32 %v184, 0.25
        %v187 = vld [vmem:[%s114 + $0x2] sm:$0x1]
        %v188 = vld [vmem:[%s114 + $0x12] sm:$0x1]
        %v189 = vmul.f32 %v187, 0.75
        %v190 = vmul.f32 %v188, 0.75
        %v191 = vadd.f32 %v185, %v189
        %v192 = vadd.f32 %v186, %v190
        %193 = vst.msk [vmem:[%s140 + $0x4] sm:$0x1] %vm144, %v191
        %194 = vst.msk [vmem:[%s140 + $0x24] sm:$0x1] %vm144, %v192
        %v195 = vld [vmem:[%s114 + $0x2] sm:$0x1]
        %v196 = vld [vmem:[%s114 + $0x12] sm:$0x1]
        %v197 = vmul.f32 %v195, 0.75
        %v198 = vmul.f32 %v196, 0.75
        %v199 = vld [vmem:[%s114 + $0x3] sm:$0x1]
        %v200 = vld [vmem:[%s114 + $0x13] sm:$0x1]
        %v201 = vmul.f32 %v199, 0.25
        %v202 = vmul.f32 %v200, 0.25
        %v203 = vadd.f32 %v197, %v201
        %v204 = vadd.f32 %v198, %v202
        %205 = vst.msk [vmem:[%s140 + $0x5] sm:$0x1] %vm144, %v203
        %206 = vst.msk [vmem:[%s140 + $0x25] sm:$0x1] %vm144, %v204
        %v207 = vld [vmem:[%s114 + $0x2] sm:$0x1]
        %v208 = vld [vmem:[%s114 + $0x12] sm:$0x1]
        %v209 = vmul.f32 %v207, 0.25
        %v210 = vmul.f32 %v208, 0.25
        %v211 = vld [vmem:[%s114 + $0x3] sm:$0x1]
        %v212 = vld [vmem:[%s114 + $0x13] sm:$0x1]
        %v213 = vmul.f32 %v211, 0.75
        %v214 = vmul.f32 %v212, 0.75
        %v215 = vadd.f32 %v209, %v213
        %v216 = vadd.f32 %v210, %v214
        %217 = vst.msk [vmem:[%s140 + $0x6] sm:$0x1] %vm144, %v215
        %218 = vst.msk [vmem:[%s140 + $0x26] sm:$0x1] %vm144, %v216
        %v219 = vld [vmem:[%s114 + $0x3] sm:$0x1]
        %v220 = vld [vmem:[%s114 + $0x13] sm:$0x1]
        %v221 = vmul.f32 %v219, 0.75
        %v222 = vmul.f32 %v220, 0.75
        %v223 = vld [vmem:[%s114 + $0x4] sm:$0x1]
        %v224 = vld [vmem:[%s114 + $0x14] sm:$0x1]
        %v225 = vmul.f32 %v223, 0.25
        %v226 = vmul.f32 %v224, 0.25
        %v227 = vadd.f32 %v221, %v225
        %v228 = vadd.f32 %v222, %v226
        %229 = vst.msk [vmem:[%s140 + $0x7] sm:$0x1] %vm144, %v227
        %230 = vst.msk [vmem:[%s140 + $0x27] sm:$0x1] %vm144, %v228
        %v231 = vld [vmem:[%s114 + $0x3] sm:$0x1]
        %v232 = vld [vmem:[%s114 + $0x13] sm:$0x1]
        %v233 = vmul.f32 %v231, 0.25
        %v234 = vmul.f32 %v232, 0.25
        %v235 = vld [vmem:[%s114 + $0x4] sm:$0x1]
        %v236 = vld [vmem:[%s114 + $0x14] sm:$0x1]
        %v237 = vmul.f32 %v235, 0.75
        %v238 = vmul.f32 %v236, 0.75
        %v239 = vadd.f32 %v233, %v237
        %v240 = vadd.f32 %v234, %v238
        %241 = vst.msk [vmem:[%s140 + $0x8] sm:$0x1] %vm144, %v239
        %242 = vst.msk [vmem:[%s140 + $0x28] sm:$0x1] %vm144, %v240
        %v243 = vld [vmem:[%s114 + $0x4] sm:$0x1]
        %v244 = vld [vmem:[%s114 + $0x14] sm:$0x1]
        %v245 = vmul.f32 %v243, 0.75
        %v246 = vmul.f32 %v244, 0.75
        %v247 = vld [vmem:[%s114 + $0x5] sm:$0x1]
        %v248 = vld [vmem:[%s114 + $0x15] sm:$0x1]
        %v249 = vmul.f32 %v247, 0.25
        %v250 = vmul.f32 %v248, 0.25
        %v251 = vadd.f32 %v245, %v249
        %v252 = vadd.f32 %v246, %v250
        %253 = vst.msk [vmem:[%s140 + $0x9] sm:$0x1] %vm144, %v251
        %254 = vst.msk [vmem:[%s140 + $0x29] sm:$0x1] %vm144, %v252
        %v255 = vld [vmem:[%s114 + $0x4] sm:$0x1]
        %v256 = vld [vmem:[%s114 + $0x14] sm:$0x1]
        %v257 = vmul.f32 %v255, 0.25
        %v258 = vmul.f32 %v256, 0.25
        %v259 = vld [vmem:[%s114 + $0x5] sm:$0x1]
        %v260 = vld [vmem:[%s114 + $0x15] sm:$0x1]
        %v261 = vmul.f32 %v259, 0.75
        %v262 = vmul.f32 %v260, 0.75
        %v263 = vadd.f32 %v257, %v261
        %v264 = vadd.f32 %v258, %v262
        %265 = vst.msk [vmem:[%s140 + $0xa] sm:$0x1] %vm144, %v263
        %266 = vst.msk [vmem:[%s140 + $0x2a] sm:$0x1] %vm144, %v264
        %v267 = vld [vmem:[%s114 + $0x5] sm:$0x1]
        %v268 = vld [vmem:[%s114 + $0x15] sm:$0x1]
        %v269 = vmul.f32 %v267, 0.75
        %v270 = vmul.f32 %v268, 0.75
        %v271 = vld [vmem:[%s114 + $0x6] sm:$0x1]
        %v272 = vld [vmem:[%s114 + $0x16] sm:$0x1]
        %v273 = vmul.f32 %v271, 0.25
        %v274 = vmul.f32 %v272, 0.25
        %v275 = vadd.f32 %v269, %v273
        %v276 = vadd.f32 %v270, %v274
        %277 = vst.msk [vmem:[%s140 + $0xb] sm:$0x1] %vm144, %v275
        %278 = vst.msk [vmem:[%s140 + $0x2b] sm:$0x1] %vm144, %v276
        %v279 = vld [vmem:[%s114 + $0x5] sm:$0x1]
        %v280 = vld [vmem:[%s114 + $0x15] sm:$0x1]
        %v281 = vmul.f32 %v279, 0.25
        %v282 = vmul.f32 %v280, 0.25
        %v283 = vld [vmem:[%s114 + $0x6] sm:$0x1]
        %v284 = vld [vmem:[%s114 + $0x16] sm:$0x1]
        %v285 = vmul.f32 %v283, 0.75
        %v286 = vmul.f32 %v284, 0.75
        %v287 = vadd.f32 %v281, %v285
        %v288 = vadd.f32 %v282, %v286
        %289 = vst.msk [vmem:[%s140 + $0xc] sm:$0x1] %vm144, %v287
        %290 = vst.msk [vmem:[%s140 + $0x2c] sm:$0x1] %vm144, %v288
        %v291 = vld [vmem:[%s114 + $0x6] sm:$0x1]
        %v292 = vld [vmem:[%s114 + $0x16] sm:$0x1]
        %v293 = vmul.f32 %v291, 0.75
        %v294 = vmul.f32 %v292, 0.75
        %v295 = vld [vmem:[%s114 + $0x7] sm:$0x1]
        %v296 = vld [vmem:[%s114 + $0x17] sm:$0x1]
        %v297 = vmul.f32 %v295, 0.25
        %v298 = vmul.f32 %v296, 0.25
        %v299 = vadd.f32 %v293, %v297
        %v300 = vadd.f32 %v294, %v298
        %301 = vst.msk [vmem:[%s140 + $0xd] sm:$0x1] %vm144, %v299
        %302 = vst.msk [vmem:[%s140 + $0x2d] sm:$0x1] %vm144, %v300
        %v303 = vld [vmem:[%s114 + $0x6] sm:$0x1]
        %v304 = vld [vmem:[%s114 + $0x16] sm:$0x1]
        %v305 = vmul.f32 %v303, 0.25
        %v306 = vmul.f32 %v304, 0.25
        %v307 = vld [vmem:[%s114 + $0x7] sm:$0x1]
        %v308 = vld [vmem:[%s114 + $0x17] sm:$0x1]
        %v309 = vmul.f32 %v307, 0.75
        %v310 = vmul.f32 %v308, 0.75
        %v311 = vadd.f32 %v305, %v309
        %v312 = vadd.f32 %v306, %v310
        %313 = vst.msk [vmem:[%s140 + $0xe] sm:$0x1] %vm144, %v311
        %314 = vst.msk [vmem:[%s140 + $0x2e] sm:$0x1] %vm144, %v312
        %v315 = vld [vmem:[%s114 + $0x7] sm:$0x1]
        %v316 = vld [vmem:[%s114 + $0x17] sm:$0x1]
        %v317 = vmul.f32 %v315, 0.75
        %v318 = vmul.f32 %v316, 0.75
        %v319 = vld [vmem:[%s114 + $0x8] sm:$0x1]
        %v320 = vld [vmem:[%s114 + $0x18] sm:$0x1]
        %v321 = vmul.f32 %v319, 0.25
        %v322 = vmul.f32 %v320, 0.25
        %v323 = vadd.f32 %v317, %v321
        %v324 = vadd.f32 %v318, %v322
        %325 = vst.msk [vmem:[%s140 + $0xf] sm:$0x1] %vm144, %v323
        %326 = vst.msk [vmem:[%s140 + $0x2f] sm:$0x1] %vm144, %v324
        %v327 = vld [vmem:[%s114 + $0x7] sm:$0x1]
        %v328 = vld [vmem:[%s114 + $0x17] sm:$0x1]
        %v329 = vmul.f32 %v327, 0.25
        %v330 = vmul.f32 %v328, 0.25
        %v331 = vld [vmem:[%s114 + $0x8] sm:$0x1]
        %v332 = vld [vmem:[%s114 + $0x18] sm:$0x1]
        %v333 = vmul.f32 %v331, 0.75
        %v334 = vmul.f32 %v332, 0.75
        %v335 = vadd.f32 %v329, %v333
        %v336 = vadd.f32 %v330, %v334
        %337 = vst.msk [vmem:[%s140 + $0x10] sm:$0x1] %vm144, %v335
        %338 = vst.msk [vmem:[%s140 + $0x30] sm:$0x1] %vm144, %v336
        %v339 = vld [vmem:[%s114 + $0x8] sm:$0x1]
        %v340 = vld [vmem:[%s114 + $0x18] sm:$0x1]
        %v341 = vmul.f32 %v339, 0.75
        %v342 = vmul.f32 %v340, 0.75
        %v343 = vld [vmem:[%s114 + $0x9] sm:$0x1]
        %v344 = vld [vmem:[%s114 + $0x19] sm:$0x1]
        %v345 = vmul.f32 %v343, 0.25
        %v346 = vmul.f32 %v344, 0.25
        %v347 = vadd.f32 %v341, %v345
        %v348 = vadd.f32 %v342, %v346
        %349 = vst.msk [vmem:[%s140 + $0x11] sm:$0x1] %vm144, %v347
        %350 = vst.msk [vmem:[%s140 + $0x31] sm:$0x1] %vm144, %v348
        %v351 = vld [vmem:[%s114 + $0x8] sm:$0x1]
        %v352 = vld [vmem:[%s114 + $0x18] sm:$0x1]
        %v353 = vmul.f32 %v351, 0.25
        %v354 = vmul.f32 %v352, 0.25
        %v355 = vld [vmem:[%s114 + $0x9] sm:$0x1]
        %v356 = vld [vmem:[%s114 + $0x19] sm:$0x1]
        %v357 = vmul.f32 %v355, 0.75
        %v358 = vmul.f32 %v356, 0.75
        %v359 = vadd.f32 %v353, %v357
        %v360 = vadd.f32 %v354, %v358
        %361 = vst.msk [vmem:[%s140 + $0x12] sm:$0x1] %vm144, %v359
        %362 = vst.msk [vmem:[%s140 + $0x32] sm:$0x1] %vm144, %v360
        %v363 = vld [vmem:[%s114 + $0x9] sm:$0x1]
        %v364 = vld [vmem:[%s114 + $0x19] sm:$0x1]
        %v365 = vmul.f32 %v363, 0.75
        %v366 = vmul.f32 %v364, 0.75
        %v367 = vld [vmem:[%s114 + $0xa] sm:$0x1]
        %v368 = vld [vmem:[%s114 + $0x1a] sm:$0x1]
        %v369 = vmul.f32 %v367, 0.25
        %v370 = vmul.f32 %v368, 0.25
        %v371 = vadd.f32 %v365, %v369
        %v372 = vadd.f32 %v366, %v370
        %373 = vst.msk [vmem:[%s140 + $0x13] sm:$0x1] %vm144, %v371
        %374 = vst.msk [vmem:[%s140 + $0x33] sm:$0x1] %vm144, %v372
        %v375 = vld [vmem:[%s114 + $0x9] sm:$0x1]
        %v376 = vld [vmem:[%s114 + $0x19] sm:$0x1]
        %v377 = vmul.f32 %v375, 0.25
        %v378 = vmul.f32 %v376, 0.25
        %v379 = vld [vmem:[%s114 + $0xa] sm:$0x1]
        %v380 = vld [vmem:[%s114 + $0x1a] sm:$0x1]
        %v381 = vmul.f32 %v379, 0.75
        %v382 = vmul.f32 %v380, 0.75
        %v383 = vadd.f32 %v377, %v381
        %v384 = vadd.f32 %v378, %v382
        %385 = vst.msk [vmem:[%s140 + $0x14] sm:$0x1] %vm144, %v383
        %386 = vst.msk [vmem:[%s140 + $0x34] sm:$0x1] %vm144, %v384
        %v387 = vld [vmem:[%s114 + $0xa] sm:$0x1]
        %v388 = vld [vmem:[%s114 + $0x1a] sm:$0x1]
        %v389 = vmul.f32 %v387, 0.75
        %v390 = vmul.f32 %v388, 0.75
        %v391 = vld [vmem:[%s114 + $0xb] sm:$0x1]
        %v392 = vld [vmem:[%s114 + $0x1b] sm:$0x1]
        %v393 = vmul.f32 %v391, 0.25
        %v394 = vmul.f32 %v392, 0.25
        %v395 = vadd.f32 %v389, %v393
        %v396 = vadd.f32 %v390, %v394
        %397 = vst.msk [vmem:[%s140 + $0x15] sm:$0x1] %vm144, %v395
        %398 = vst.msk [vmem:[%s140 + $0x35] sm:$0x1] %vm144, %v396
        %v399 = vld [vmem:[%s114 + $0xa] sm:$0x1]
        %v400 = vld [vmem:[%s114 + $0x1a] sm:$0x1]
        %v401 = vmul.f32 %v399, 0.25
        %v402 = vmul.f32 %v400, 0.25
        %v403 = vld [vmem:[%s114 + $0xb] sm:$0x1]
        %v404 = vld [vmem:[%s114 + $0x1b] sm:$0x1]
        %v405 = vmul.f32 %v403, 0.75
        %v406 = vmul.f32 %v404, 0.75
        %v407 = vadd.f32 %v401, %v405
        %v408 = vadd.f32 %v402, %v406
        %409 = vst.msk [vmem:[%s140 + $0x16] sm:$0x1] %vm144, %v407
        %410 = vst.msk [vmem:[%s140 + $0x36] sm:$0x1] %vm144, %v408
        %v411 = vld [vmem:[%s114 + $0xb] sm:$0x1]
        %v412 = vld [vmem:[%s114 + $0x1b] sm:$0x1]
        %v413 = vmul.f32 %v411, 0.75
        %v414 = vmul.f32 %v412, 0.75
        %v415 = vld [vmem:[%s114 + $0xc] sm:$0x1]
        %v416 = vld [vmem:[%s114 + $0x1c] sm:$0x1]
        %v417 = vmul.f32 %v415, 0.25
        %v418 = vmul.f32 %v416, 0.25
        %v419 = vadd.f32 %v413, %v417
        %v420 = vadd.f32 %v414, %v418
        %421 = vst.msk [vmem:[%s140 + $0x17] sm:$0x1] %vm144, %v419
        %422 = vst.msk [vmem:[%s140 + $0x37] sm:$0x1] %vm144, %v420
        %v423 = vld [vmem:[%s114 + $0xb] sm:$0x1]
        %v424 = vld [vmem:[%s114 + $0x1b] sm:$0x1]
        %v425 = vmul.f32 %v423, 0.25
        %v426 = vmul.f32 %v424, 0.25
        %v427 = vld [vmem:[%s114 + $0xc] sm:$0x1]
        %v428 = vld [vmem:[%s114 + $0x1c] sm:$0x1]
        %v429 = vmul.f32 %v427, 0.75
        %v430 = vmul.f32 %v428, 0.75
        %v431 = vadd.f32 %v425, %v429
        %v432 = vadd.f32 %v426, %v430
        %433 = vst.msk [vmem:[%s140 + $0x18] sm:$0x1] %vm144, %v431
        %434 = vst.msk [vmem:[%s140 + $0x38] sm:$0x1] %vm144, %v432
        %v435 = vld [vmem:[%s114 + $0xc] sm:$0x1]
        %v436 = vld [vmem:[%s114 + $0x1c] sm:$0x1]
        %v437 = vmul.f32 %v435, 0.75
        %v438 = vmul.f32 %v436, 0.75
        %v439 = vld [vmem:[%s114 + $0xd] sm:$0x1]
        %v440 = vld [vmem:[%s114 + $0x1d] sm:$0x1]
        %v441 = vmul.f32 %v439, 0.25
        %v442 = vmul.f32 %v440, 0.25
        %v443 = vadd.f32 %v437, %v441
        %v444 = vadd.f32 %v438, %v442
        %445 = vst.msk [vmem:[%s140 + $0x19] sm:$0x1] %vm144, %v443
        %446 = vst.msk [vmem:[%s140 + $0x39] sm:$0x1] %vm144, %v444
        %v447 = vld [vmem:[%s114 + $0xc] sm:$0x1]
        %v448 = vld [vmem:[%s114 + $0x1c] sm:$0x1]
        %v449 = vmul.f32 %v447, 0.25
        %v450 = vmul.f32 %v448, 0.25
        %v451 = vld [vmem:[%s114 + $0xd] sm:$0x1]
        %v452 = vld [vmem:[%s114 + $0x1d] sm:$0x1]
        %v453 = vmul.f32 %v451, 0.75
        %v454 = vmul.f32 %v452, 0.75
        %v455 = vadd.f32 %v449, %v453
        %v456 = vadd.f32 %v450, %v454
        %457 = vst.msk [vmem:[%s140 + $0x1a] sm:$0x1] %vm144, %v455
        %458 = vst.msk [vmem:[%s140 + $0x3a] sm:$0x1] %vm144, %v456
        %v459 = vld [vmem:[%s114 + $0xd] sm:$0x1]
        %v460 = vld [vmem:[%s114 + $0x1d] sm:$0x1]
        %v461 = vmul.f32 %v459, 0.75
        %v462 = vmul.f32 %v460, 0.75
        %v463 = vld [vmem:[%s114 + $0xe] sm:$0x1]
        %v464 = vld [vmem:[%s114 + $0x1e] sm:$0x1]
        %v465 = vmul.f32 %v463, 0.25
        %v466 = vmul.f32 %v464, 0.25
        %v467 = vadd.f32 %v461, %v465
        %v468 = vadd.f32 %v462, %v466
        %469 = vst.msk [vmem:[%s140 + $0x1b] sm:$0x1] %vm144, %v467
        %470 = vst.msk [vmem:[%s140 + $0x3b] sm:$0x1] %vm144, %v468
        %v471 = vld [vmem:[%s114 + $0xd] sm:$0x1]
        %v472 = vld [vmem:[%s114 + $0x1d] sm:$0x1]
        %v473 = vmul.f32 %v471, 0.25
        %v474 = vmul.f32 %v472, 0.25
        %v475 = vld [vmem:[%s114 + $0xe] sm:$0x1]
        %v476 = vld [vmem:[%s114 + $0x1e] sm:$0x1]
        %v477 = vmul.f32 %v475, 0.75
        %v478 = vmul.f32 %v476, 0.75
        %v479 = vadd.f32 %v473, %v477
        %v480 = vadd.f32 %v474, %v478
        %481 = vst.msk [vmem:[%s140 + $0x1c] sm:$0x1] %vm144, %v479
        %482 = vst.msk [vmem:[%s140 + $0x3c] sm:$0x1] %vm144, %v480
        %v483 = vld [vmem:[%s114 + $0xe] sm:$0x1]
        %v484 = vld [vmem:[%s114 + $0x1e] sm:$0x1]
        %v485 = vmul.f32 %v483, 0.75
        %v486 = vmul.f32 %v484, 0.75
        %v487 = vld [vmem:[%s114 + $0xf] sm:$0x1]
        %v488 = vld [vmem:[%s114 + $0x1f] sm:$0x1]
        %v489 = vmul.f32 %v487, 0.25
        %v490 = vmul.f32 %v488, 0.25
        %v491 = vadd.f32 %v485, %v489
        %v492 = vadd.f32 %v486, %v490
        %493 = vst.msk [vmem:[%s140 + $0x1d] sm:$0x1] %vm144, %v491
        %494 = vst.msk [vmem:[%s140 + $0x3d] sm:$0x1] %vm144, %v492
        %v495 = vld [vmem:[%s114 + $0xe] sm:$0x1]
        %v496 = vld [vmem:[%s114 + $0x1e] sm:$0x1]
        %v497 = vmul.f32 %v495, 0.25
        %v498 = vmul.f32 %v496, 0.25
        %v499 = vld [vmem:[%s114 + $0xf] sm:$0x1]
        %v500 = vld [vmem:[%s114 + $0x1f] sm:$0x1]
        %v501 = vmul.f32 %v499, 0.75
        %v502 = vmul.f32 %v500, 0.75
        %v503 = vadd.f32 %v497, %v501
        %v504 = vadd.f32 %v498, %v502
        %505 = vst.msk [vmem:[%s140 + $0x1e] sm:$0x1] %vm144, %v503
        %506 = vst.msk [vmem:[%s140 + $0x3e] sm:$0x1] %vm144, %v504
        %v507 = vld [vmem:[%s114 + $0xf] sm:$0x1]
        %v508 = vld [vmem:[%s114 + $0x1f] sm:$0x1]
        %509 = vst.msk [vmem:[%s140 + $0x1f] sm:$0x1] %vm144, %v507
        %510 = vst.msk [vmem:[%s140 + $0x3f] sm:$0x1] %vm144, %v508
        %s511 = smul.u32 2, %s15
        %p512 = scmp.lt.s32.totalorder %s511, 7
        %s513 = scalar_select %p512, %s511, 7
        %s514 = smul.addr %s513, 4
        %s515 = smul.addr %s514, 8
        %s516 = scalar_lea.vmem %s1, %s515
        // Predicated region
        $region29: #{tpu_custom_call.1} parent=23 // pred_check
          %p517 = pneg %p59
        $region30: #{tpu_custom_call.1} parent=23 // pred_check_branch
          %519 = sbr.rel (%p517) target = $region32
        $region31: #{tpu_custom_call.1} parent=23 // pred_region
          %s520 = smul.u32 2, %s15
        $region32: #{tpu_custom_call.1} parent=23 // pred_fallthru
          _
      $region24: #{tpu_custom_call.1} parent=5 // pred_fallthru
        _
      %p521 = scmp.le.s32.totalorder 2, %s10
      // Predicated region
      $region33: #{tpu_custom_call.1} parent=5 // pred_check
        %p522 = pneg %p521
      $region34: #{tpu_custom_call.1} parent=5 // pred_check_branch
        %524 = sbr.rel (%p522) target = $region36
      $region35: #{tpu_custom_call.1} parent=5 // pred_region
        %s525 = ssub.s32 %s10, 2
        // Predicated region
        $region37: #{tpu_custom_call.1} parent=35 // pred_check
          %p526 = pneg %p65
        $region38: #{tpu_custom_call.1} parent=35 // pred_check_branch
          %528 = sbr.rel (%p526) target = $region40
        $region39: #{tpu_custom_call.1} parent=35 // pred_region
          %s529 = smul.u32 2, %s16
          %p530 = scmp.lt.s32.totalorder %s529, 7
          %s531 = scalar_select %p530, %s529, 7
          %s532 = smul.addr %s531, 4
          %s533 = smul.addr %s532, 8
          %s534 = scalar_lea.vmem %s1, %s533
        $region40: #{tpu_custom_call.1} parent=35 // pred_fallthru
          _
      $region36: #{tpu_custom_call.1} parent=5 // pred_fallthru
        _
    $region6: #{tpu_custom_call.1} parent=1 // loop_footer
      %s14 = sadd.s32 1, %s10
    $region7: #{tpu_custom_call.1} parent=1 // loop_footer_branch
      %9 = sbr.rel target = $region3
    $region8: #{tpu_custom_call.1} parent=1 // loop_exit
      _
    %535 = vsyncpa [#allocation3], 1
    %s536 = scalar_lea.sflag [#allocation3], 1
    %537 = vsyncpa %s536, 1

</llo_original>
